<compile_context>
chip_gen: v5e
topology: v5e:2x2
jax: 0.10.0
libtpu: 0.0.40
codegen_flags: <defaults>
</compile_context>

<pallas_src>
import math

import numpy as np
import jax
import jax.numpy as jnp
from jax.experimental import pallas as pl
from jax.experimental.pallas import tpu as pltpu  # noqa: F401  (kept for TPU-specific tuning hooks)

# ---- small shapes consistent with the module ----
VOCAB      = 64          # vocab_size (also max positional-encoding length)
D_MODEL    = 32          # d_model (embedding dim)
NHEAD      = 4           # must divide d_model
HEAD_DIM   = D_MODEL // NHEAD
DIM_FF     = 64          # dim_feedforward
NUM_LAYERS = 2           # num_layers
STATIC     = 16          # static_size
N1         = 32          # n_node_layer1
N2         = 16          # n_node_layer2
NCLASS     = 3
BATCH      = 2
SEQ        = 8
LN_EPS     = 1e-5
BN_EPS     = 1e-5
INV_SQRT_DH = 1.0 / math.sqrt(HEAD_DIM)

LANES  = 128
BS     = BATCH * SEQ
K_EMB  = VOCAB + BS      # one-hot width with the PE identity block folded in

assert SEQ <= VOCAB, "positional-encoding buffer must cover the sequence length"


# --------------------------- parameter slab layout -----------------------------

def _build_param_shapes():
    shapes = [
        ("emb_pe", (K_EMB, D_MODEL)),      # scaled embedding table stacked over tiled PE rows
        ("seg",    (D_MODEL, NHEAD)),      # per-head segment-sum matrix
        ("seg_t",  (NHEAD, D_MODEL)),      # per-head broadcast matrix
        ("pool",   (BATCH, BS)),           # mean-pool over SEQ
    ]
    for l in range(NUM_LAYERS):
        shapes += [
            (f"wqkv{l}", (D_MODEL, 3 * D_MODEL)),
            (f"bqkv{l}", (1, 3 * D_MODEL)),
            (f"opw{l}",  (D_MODEL, D_MODEL)),
            (f"opb{l}",  (1, D_MODEL)),
            (f"ln1g{l}", (1, D_MODEL)),
            (f"ln1b{l}", (1, D_MODEL)),
            (f"f1w{l}",  (D_MODEL, DIM_FF)),
            (f"f1b{l}",  (1, DIM_FF)),
            (f"f2w{l}",  (DIM_FF, D_MODEL)),
            (f"f2b{l}",  (1, D_MODEL)),
            (f"ln2g{l}", (1, D_MODEL)),
            (f"ln2b{l}", (1, D_MODEL)),
        ]
    shapes += [
        ("w1_tf", (D_MODEL, N1)),
        ("w1_st", (STATIC, N1)),
        ("b1",    (1, N1)),
        ("bn1_s", (1, N1)),
        ("bn1_t", (1, N1)),
        ("w2",    (N1, N2)),
        ("b2",    (1, N2)),
        ("bn2_s", (1, N2)),
        ("bn2_t", (1, N2)),
        ("wc",    (N2, LANES)),            # zero-padded to 128 lanes -> lane-dense output
        ("bc",    (1, LANES)),
    ]
    return shapes


def _make_layout(shapes):
    layout, off = {}, 0
    for name, (r, c) in shapes:
        layout[name] = (off, r, c)
        off += -(-r // 8) * 8              # pad every param to an 8-row boundary
    return layout, off


_LAYOUT, _SLAB_ROWS = _make_layout(_build_param_shapes())


# --------------------------- fused Pallas kernel ------------------------------

def _layer_norm(x, g, b):
    mu = jnp.mean(x, axis=-1, keepdims=True)
    xc = x - mu
    var = jnp.mean(xc * xc, axis=-1, keepdims=True)
    return xc * jax.lax.rsqrt(var + LN_EPS) * g + b


def _fused_forward_kernel(ids_ref, xs_ref, slab_ref, o_ref):
    f32 = jnp.float32

    def P(name):
        off, r, c = _LAYOUT[name]
        return slab_ref[off:off + r, :c]          # static, tile-aligned slice

    # ---- embedding gather + positional encoding fused into one matmul ----
    # one-hot(ids) over VOCAB columns, plus an identity block over the last BS
    # columns; the table has pe_bs stacked under emb*sqrt(D), so the single
    # (BS, 80) x (80, D) matmul yields emb[ids]*sqrt(D) + pe[s].
    ids = ids_ref[...]                                                  # (BS, 1) int32
    row = jax.lax.broadcasted_iota(jnp.int32, (BS, K_EMB), 0)
    col = jax.lax.broadcasted_iota(jnp.int32, (BS, K_EMB), 1)
    onehot = jnp.where(jnp.logical_or(col == ids, col == row + VOCAB), 1.0, 0.0)
    x = jnp.dot(onehot, P("emb_pe"), preferred_element_type=f32)        # (BS, D)

    seg = P("seg")        # (D, H): sums each head's dh lanes
    seg_t = P("seg_t")    # (H, D): broadcasts a per-head scalar across its lanes

    # ---- transformer encoder layers (post-norm, ReLU FFN, eval mode) ----
    for l in range(NUM_LAYERS):
        # fused q/k/v projection: one matmul + one bias add, then lane slices
        qkv = jnp.dot(x, P(f"wqkv{l}"), preferred_element_type=f32) + P(f"bqkv{l}")
        q = qkv[:, 0:D_MODEL]
        k = qkv[:, D_MODEL:2 * D_MODEL]
        v = qkv[:, 2 * D_MODEL:3 * D_MODEL]

        # self attention; batch_first=False => mixes over axis 0 (= B) per s index.
        # Stack all (b, c) query/key pair products along sublanes -> ONE seg matmul.
        prod_blocks = []
        for b in range(BATCH):
            qb = q[b * SEQ:(b + 1) * SEQ, :]
            for c in range(BATCH):
                kc = k[c * SEQ:(c + 1) * SEQ, :]
                prod_blocks.append(qb * kc)
        prod = jnp.concatenate(prod_blocks, axis=0)                     # (B*B*S, D)
        scores = jnp.dot(prod, seg, preferred_element_type=f32) * INV_SQRT_DH  # (B*B*S, H)

        # softmax over the key axis (c) for every (b, s, h); then stack the
        # normalized weights and expand per-head scalars with ONE seg_t matmul.
        w_blocks = []
        for b in range(BATCH):
            sc = [scores[(b * BATCH + c) * SEQ:(b * BATCH + c + 1) * SEQ, :]
                  for c in range(BATCH)]
            m = sc[0]
            for s_ in sc[1:]:
                m = jnp.maximum(m, s_)
            exps = [jnp.exp(s_ - m) for s_ in sc]
            denom = exps[0]
            for e in exps[1:]:
                denom = denom + e
            inv = pl.reciprocal(denom, approx=True)                     # EUP
            w_blocks.extend(e * inv for e in exps)
        w = jnp.concatenate(w_blocks, axis=0)                           # (B*B*S, H)
        w_full = jnp.dot(w, seg_t, preferred_element_type=f32)          # (B*B*S, D)

        # context per query row b, kept in registers (no VMEM scratch round trip)
        ctx_blocks = []
        for b in range(BATCH):
            ctx = None
            for c in range(BATCH):
                blk = (b * BATCH + c) * SEQ
                term = w_full[blk:blk + SEQ, :] * v[c * SEQ:(c + 1) * SEQ, :]
                ctx = term if ctx is None else ctx + term
            ctx_blocks.append(ctx)
        attn = jnp.concatenate(ctx_blocks, axis=0)                      # (BS, D)

        attn = jnp.dot(attn, P(f"opw{l}"), preferred_element_type=f32) + P(f"opb{l}")
        x = _layer_norm(x + attn, P(f"ln1g{l}"), P(f"ln1b{l}"))          # norm1(x + attn)

        ff = jnp.dot(x, P(f"f1w{l}"), preferred_element_type=f32) + P(f"f1b{l}")
        ff = jnp.maximum(ff, 0.0)
        ff = jnp.dot(ff, P(f"f2w{l}"), preferred_element_type=f32) + P(f"f2b{l}")
        x = _layer_norm(x + ff, P(f"ln2g{l}"), P(f"ln2b{l}"))            # norm2(x + ffn)

    # ---- mean pool over seq (dim=1 in original layout) via (B, B*S) matrix ----
    pooled = jnp.dot(P("pool"), x, preferred_element_type=f32)           # (B, D)

    # ---- classifier head; concat([TF_out, x_static]) folded into split weight ----
    xs = xs_ref[...]
    h = (jnp.dot(pooled, P("w1_tf"), preferred_element_type=f32)
         + jnp.dot(xs, P("w1_st"), preferred_element_type=f32)
         + P("b1"))
    h = jnp.maximum(h, 0.0) * P("bn1_s") + P("bn1_t")                    # ReLU + BN1 (eval)
    h = jnp.dot(h, P("w2"), preferred_element_type=f32) + P("b2")
    h = jnp.maximum(h, 0.0) * P("bn2_s") + P("bn2_t")                    # ReLU + BN2 (eval)
    # lane-dense (B, 128) store; real logits occupy lanes 0..NCLASS-1
    o_ref[...] = jnp.dot(h, P("wc"), preferred_element_type=f32) + P("bc")


# --------------------------- model forward -----------------------------------

def forward(params, x_ids, x_static):
    B, S = x_ids.shape
    assert B == BATCH and S == SEQ and S <= VOCAB
    ids = x_ids.reshape(B * S, 1).astype(jnp.int32)          # rows b-major (b*S + s)
    out = pl.pallas_call(
        _fused_forward_kernel,
        out_shape=jax.ShapeDtypeStruct((B, LANES), jnp.float32),
    )(ids, x_static, params["slab"])
    return out[:, :NCLASS]


# --------------------------- parameter init ----------------------------------

def init_params(key):
    def norm(k, shape, scale=0.1):
        return scale * jax.random.normal(k, shape, dtype=jnp.float32)

    keys = iter(jax.random.split(key, 64))
    vals = {}

    # embedding table with * sqrt(d_model) folded, stacked over tiled PE rows
    emb = norm(next(keys), (VOCAB, D_MODEL), 1.0) * math.sqrt(D_MODEL)
    pos = jnp.arange(VOCAB, dtype=jnp.float32)[:, None]
    div = jnp.exp(jnp.arange(0, D_MODEL, 2, dtype=jnp.float32) *
                  (-math.log(10000.0) / D_MODEL))
    pe = jnp.zeros((VOCAB, D_MODEL), jnp.float32)
    pe = pe.at[:, 0::2].set(jnp.sin(pos * div))
    pe = pe.at[:, 1::2].set(jnp.cos(pos * div))
    pe_bs = jnp.tile(pe[:SEQ, :], (BATCH, 1))                 # (BS, D), b-major rows
    vals["emb_pe"] = jnp.concatenate([emb, pe_bs], axis=0)    # (VOCAB+BS, D)

    # constant helper matrices used inside the fused kernel
    vals["seg"] = (jnp.arange(D_MODEL)[:, None] // HEAD_DIM ==
                   jnp.arange(NHEAD)[None, :]).astype(jnp.float32)       # (D, H)
    vals["seg_t"] = vals["seg"].T                                        # (H, D)
    vals["pool"] = ((jnp.arange(BATCH)[:, None] ==
                     jnp.arange(BS)[None, :] // SEQ)
                    .astype(jnp.float32) / SEQ)                          # (B, B*S)

    # attention / FFN params per layer (q/k/v fused into one (D, 3D) matrix)
    for l in range(NUM_LAYERS):
        wq = norm(next(keys), (D_MODEL, D_MODEL))
        wk = norm(next(keys), (D_MODEL, D_MODEL))
        wv = norm(next(keys), (D_MODEL, D_MODEL))
        bq = norm(next(keys), (1, D_MODEL))
        bk = norm(next(keys), (1, D_MODEL))
        bv = norm(next(keys), (1, D_MODEL))
        vals[f"wqkv{l}"] = jnp.concatenate([wq, wk, wv], axis=1)         # (D, 3D)
        vals[f"bqkv{l}"] = jnp.concatenate([bq, bk, bv], axis=1)         # (1, 3D)
        vals[f"opw{l}"] = norm(next(keys), (D_MODEL, D_MODEL))
        vals[f"opb{l}"] = norm(next(keys), (1, D_MODEL))
        vals[f"ln1g{l}"] = jnp.ones((1, D_MODEL), jnp.float32)
        vals[f"ln1b{l}"] = jnp.zeros((1, D_MODEL), jnp.float32)
        vals[f"f1w{l}"] = norm(next(keys), (D_MODEL, DIM_FF))
        vals[f"f1b{l}"] = norm(next(keys), (1, DIM_FF))
        vals[f"f2w{l}"] = norm(next(keys), (DIM_FF, D_MODEL))
        vals[f"f2b{l}"] = norm(next(keys), (1, D_MODEL))
        vals[f"ln2g{l}"] = jnp.ones((1, D_MODEL), jnp.float32)
        vals[f"ln2b{l}"] = jnp.zeros((1, D_MODEL), jnp.float32)

    # classifier head; linear1 split so concat([TF_out, x_static]) never materializes
    w1 = norm(next(keys), (D_MODEL + STATIC, N1))
    vals["w1_tf"] = w1[:D_MODEL, :]
    vals["w1_st"] = w1[D_MODEL:, :]
    vals["b1"] = norm(next(keys), (1, N1))
    vals["w2"] = norm(next(keys), (N1, N2))
    vals["b2"] = norm(next(keys), (1, N2))
    wc = norm(next(keys), (N2, NCLASS))
    bc = norm(next(keys), (1, NCLASS))
    vals["wc"] = jnp.concatenate(
        [wc, jnp.zeros((N2, LANES - NCLASS), jnp.float32)], axis=1)      # lane-dense pad
    vals["bc"] = jnp.concatenate(
        [bc, jnp.zeros((1, LANES - NCLASS), jnp.float32)], axis=1)

    # BatchNorm1d (eval): y = (x - rm)/sqrt(rv+eps)*gamma + beta, folded to scale/shift
    for i, n in ((1, N1), (2, N2)):
        gamma = 1.0 + norm(next(keys), (n,))
        beta = norm(next(keys), (n,))
        rm = jnp.zeros((n,), jnp.float32)
        rv = jnp.ones((n,), jnp.float32)
        scale = gamma / jnp.sqrt(rv + BN_EPS)
        vals[f"bn{i}_s"] = scale.reshape(1, n)
        vals[f"bn{i}_t"] = (beta - rm * scale).reshape(1, n)

    # pack everything into one lane-dense (rows, 128) f32 slab -> one HBM->VMEM DMA
    slab = np.zeros((_SLAB_ROWS, LANES), np.float32)
    for name, (off, r, c) in _LAYOUT.items():
        arr = np.asarray(vals[name], np.float32)
        assert arr.shape == (r, c), (name, arr.shape, (r, c))
        slab[off:off + r, :c] = arr
    return {"slab": jnp.asarray(slab)}


# --------------------------- main ---------------------------------------------

if __name__ == "__main__":
    key = jax.random.PRNGKey(0)
    k_ids, k_static, k_params = jax.random.split(key, 3)

    x_ids = jax.random.randint(k_ids, (BATCH, SEQ), 0, VOCAB, dtype=jnp.int32)
    x_static = jax.random.normal(k_static, (BATCH, STATIC), dtype=jnp.float32)
    params = init_params(k_params)

    logits = jax.jit(forward)(params, x_ids, x_static)
    jax.block_until_ready(logits)

    assert logits.shape == (BATCH, NCLASS), logits.shape
    assert bool(jnp.all(jnp.isfinite(logits)))
    print("KERNEL_OK")
</pallas_src>

<mosaic_0001>
module attributes {stable_mosaic.version = 11 : i64} {
  func.func @_fused_forward_kernel(%arg0: memref<16x1xi32, #tpu.memory_space<vmem>>, %arg1: memref<2x16xf32, #tpu.memory_space<vmem>>, %arg2: memref<728x128xf32, #tpu.memory_space<vmem>>, %arg3: memref<2x128xf32, #tpu.memory_space<vmem>>) attributes {dimension_semantics = [], scalar_prefetch = 0 : i64, scratch_operands = 0 : i64, tpu.core_type = #tpu.core_type<tc>} {
    %c0 = arith.constant 0 : index
    %c0_0 = arith.constant 0 : index
    %0 = vector.load %arg0[%c0, %c0_0] : memref<16x1xi32, #tpu.memory_space<vmem>>, vector<16x1xi32>
    %1 = tpu.iota {dimensions = array<i32: 0>} : vector<16x80xi32>
    %2 = tpu.iota {dimensions = array<i32: 1>} : vector<16x80xi32>
    %3 = vector.broadcast %0 : vector<16x1xi32> to vector<16x80xi32>
    %4 = arith.cmpi eq, %2, %3 : vector<16x80xi32>
    %c64_i32 = arith.constant 64 : i32
    %5 = vector.broadcast %c64_i32 : i32 to vector<16x80xi32>
    %6 = arith.addi %1, %5 : vector<16x80xi32>
    %7 = arith.cmpi eq, %2, %6 : vector<16x80xi32>
    %8 = arith.ori %4, %7 : vector<16x80xi1>
    %cst = arith.constant 1.000000e+00 : f32
    %cst_1 = arith.constant 0.000000e+00 : f32
    %9 = vector.broadcast %cst : f32 to vector<16x80xf32>
    %10 = vector.broadcast %cst_1 : f32 to vector<16x80xf32>
    %11 = arith.select %8, %9, %10 : vector<16x80xi1>, vector<16x80xf32>
    %c0_2 = arith.constant 0 : index
    %c0_3 = arith.constant 0 : index
    %12 = vector.load %arg2[%c0_2, %c0_3] : memref<728x128xf32, #tpu.memory_space<vmem>>, vector<80x32xf32>
    %cst_4 = arith.constant dense<0.000000e+00> : vector<16x32xf32>
    %13 = tpu.matmul %11, %12, %cst_4 {dimension_numbers = #tpu.dot_dimension_numbers<[1], [0], [0], [1], [0, 0, 1, 1], [], []>} : vector<16x80xf32>, vector<80x32xf32>, vector<16x32xf32> -> vector<16x32xf32>
    %c80 = arith.constant 80 : index
    %c0_5 = arith.constant 0 : index
    %14 = vector.load %arg2[%c80, %c0_5] : memref<728x128xf32, #tpu.memory_space<vmem>>, vector<32x4xf32>
    %c112 = arith.constant 112 : index
    %c0_6 = arith.constant 0 : index
    %15 = vector.load %arg2[%c112, %c0_6] : memref<728x128xf32, #tpu.memory_space<vmem>>, vector<4x32xf32>
    %c128 = arith.constant 128 : index
    %c0_7 = arith.constant 0 : index
    %16 = vector.load %arg2[%c128, %c0_7] : memref<728x128xf32, #tpu.memory_space<vmem>>, vector<32x96xf32>
    %cst_8 = arith.constant dense<0.000000e+00> : vector<16x96xf32>
    %17 = tpu.matmul %13, %16, %cst_8 {dimension_numbers = #tpu.dot_dimension_numbers<[1], [0], [0], [1], [0, 0, 1, 1], [], []>} : vector<16x32xf32>, vector<32x96xf32>, vector<16x96xf32> -> vector<16x96xf32>
    %c160 = arith.constant 160 : index
    %c0_9 = arith.constant 0 : index
    %18 = vector.load %arg2[%c160, %c0_9] : memref<728x128xf32, #tpu.memory_space<vmem>>, vector<1x96xf32>
    %19 = vector.broadcast %18 : vector<1x96xf32> to vector<16x96xf32>
    %20 = arith.addf %17, %19 : vector<16x96xf32>
    %21 = vector.extract_strided_slice %20 {offsets = [0, 0], sizes = [16, 32], strides = [1, 1]} : vector<16x96xf32> to vector<16x32xf32>
    %22 = vector.extract_strided_slice %20 {offsets = [0, 32], sizes = [16, 32], strides = [1, 1]} : vector<16x96xf32> to vector<16x32xf32>
    %23 = vector.extract_strided_slice %20 {offsets = [0, 64], sizes = [16, 32], strides = [1, 1]} : vector<16x96xf32> to vector<16x32xf32>
    %24 = vector.extract_strided_slice %21 {offsets = [0, 0], sizes = [8, 32], strides = [1, 1]} : vector<16x32xf32> to vector<8x32xf32>
    %25 = vector.extract_strided_slice %22 {offsets = [0, 0], sizes = [8, 32], strides = [1, 1]} : vector<16x32xf32> to vector<8x32xf32>
    %26 = arith.mulf %24, %25 : vector<8x32xf32>
    %27 = vector.extract_strided_slice %22 {offsets = [8, 0], sizes = [8, 32], strides = [1, 1]} : vector<16x32xf32> to vector<8x32xf32>
    %28 = arith.mulf %24, %27 : vector<8x32xf32>
    %29 = vector.extract_strided_slice %21 {offsets = [8, 0], sizes = [8, 32], strides = [1, 1]} : vector<16x32xf32> to vector<8x32xf32>
    %30 = vector.extract_strided_slice %22 {offsets = [0, 0], sizes = [8, 32], strides = [1, 1]} : vector<16x32xf32> to vector<8x32xf32>
    %31 = arith.mulf %29, %30 : vector<8x32xf32>
    %32 = vector.extract_strided_slice %22 {offsets = [8, 0], sizes = [8, 32], strides = [1, 1]} : vector<16x32xf32> to vector<8x32xf32>
    %33 = arith.mulf %29, %32 : vector<8x32xf32>
    %34 = tpu.concatenate %26, %28, %31, %33 in 0 : vector<8x32xf32>, vector<8x32xf32>, vector<8x32xf32>, vector<8x32xf32> -> vector<32x32xf32>
    %cst_10 = arith.constant dense<0.000000e+00> : vector<32x4xf32>
    %35 = tpu.matmul %34, %14, %cst_10 {dimension_numbers = #tpu.dot_dimension_numbers<[1], [0], [0], [1], [0, 0, 1, 1], [], []>} : vector<32x32xf32>, vector<32x4xf32>, vector<32x4xf32> -> vector<32x4xf32>
    %cst_11 = arith.constant 0.353553385 : f32
    %36 = vector.broadcast %cst_11 : f32 to vector<32x4xf32>
    %37 = arith.mulf %35, %36 : vector<32x4xf32>
    %38 = vector.extract_strided_slice %37 {offsets = [0, 0], sizes = [8, 4], strides = [1, 1]} : vector<32x4xf32> to vector<8x4xf32>
    %39 = vector.extract_strided_slice %37 {offsets = [8, 0], sizes = [8, 4], strides = [1, 1]} : vector<32x4xf32> to vector<8x4xf32>
    %40 = arith.maximumf %38, %39 : vector<8x4xf32>
    %41 = arith.subf %38, %40 : vector<8x4xf32>
    %42 = math.exp %41 : vector<8x4xf32>
    %43 = arith.subf %39, %40 : vector<8x4xf32>
    %44 = math.exp %43 : vector<8x4xf32>
    %45 = arith.addf %42, %44 : vector<8x4xf32>
    %46 = tpu.reciprocal %45 {approx = true} : vector<8x4xf32> -> vector<8x4xf32>
    %47 = arith.mulf %42, %46 : vector<8x4xf32>
    %48 = arith.mulf %44, %46 : vector<8x4xf32>
    %49 = vector.extract_strided_slice %37 {offsets = [16, 0], sizes = [8, 4], strides = [1, 1]} : vector<32x4xf32> to vector<8x4xf32>
    %50 = vector.extract_strided_slice %37 {offsets = [24, 0], sizes = [8, 4], strides = [1, 1]} : vector<32x4xf32> to vector<8x4xf32>
    %51 = arith.maximumf %49, %50 : vector<8x4xf32>
    %52 = arith.subf %49, %51 : vector<8x4xf32>
    %53 = math.exp %52 : vector<8x4xf32>
    %54 = arith.subf %50, %51 : vector<8x4xf32>
    %55 = math.exp %54 : vector<8x4xf32>
    %56 = arith.addf %53, %55 : vector<8x4xf32>
    %57 = tpu.reciprocal %56 {approx = true} : vector<8x4xf32> -> vector<8x4xf32>
    %58 = arith.mulf %53, %57 : vector<8x4xf32>
    %59 = arith.mulf %55, %57 : vector<8x4xf32>
    %60 = tpu.concatenate %47, %48, %58, %59 in 0 : vector<8x4xf32>, vector<8x4xf32>, vector<8x4xf32>, vector<8x4xf32> -> vector<32x4xf32>
    %cst_12 = arith.constant dense<0.000000e+00> : vector<32x32xf32>
    %61 = tpu.matmul %60, %15, %cst_12 {dimension_numbers = #tpu.dot_dimension_numbers<[1], [0], [0], [1], [0, 0, 1, 1], [], []>} : vector<32x4xf32>, vector<4x32xf32>, vector<32x32xf32> -> vector<32x32xf32>
    %62 = vector.extract_strided_slice %61 {offsets = [0, 0], sizes = [8, 32], strides = [1, 1]} : vector<32x32xf32> to vector<8x32xf32>
    %63 = vector.extract_strided_slice %23 {offsets = [0, 0], sizes = [8, 32], strides = [1, 1]} : vector<16x32xf32> to vector<8x32xf32>
    %64 = arith.mulf %62, %63 : vector<8x32xf32>
    %65 = vector.extract_strided_slice %61 {offsets = [8, 0], sizes = [8, 32], strides = [1, 1]} : vector<32x32xf32> to vector<8x32xf32>
    %66 = vector.extract_strided_slice %23 {offsets = [8, 0], sizes = [8, 32], strides = [1, 1]} : vector<16x32xf32> to vector<8x32xf32>
    %67 = arith.mulf %65, %66 : vector<8x32xf32>
    %68 = arith.addf %64, %67 : vector<8x32xf32>
    %69 = vector.extract_strided_slice %61 {offsets = [16, 0], sizes = [8, 32], strides = [1, 1]} : vector<32x32xf32> to vector<8x32xf32>
    %70 = vector.extract_strided_slice %23 {offsets = [0, 0], sizes = [8, 32], strides = [1, 1]} : vector<16x32xf32> to vector<8x32xf32>
    %71 = arith.mulf %69, %70 : vector<8x32xf32>
    %72 = vector.extract_strided_slice %61 {offsets = [24, 0], sizes = [8, 32], strides = [1, 1]} : vector<32x32xf32> to vector<8x32xf32>
    %73 = vector.extract_strided_slice %23 {offsets = [8, 0], sizes = [8, 32], strides = [1, 1]} : vector<16x32xf32> to vector<8x32xf32>
    %74 = arith.mulf %72, %73 : vector<8x32xf32>
    %75 = arith.addf %71, %74 : vector<8x32xf32>
    %76 = tpu.concatenate %68, %75 in 0 : vector<8x32xf32>, vector<8x32xf32> -> vector<16x32xf32>
    %c168 = arith.constant 168 : index
    %c0_13 = arith.constant 0 : index
    %77 = vector.load %arg2[%c168, %c0_13] : memref<728x128xf32, #tpu.memory_space<vmem>>, vector<32x32xf32>
    %cst_14 = arith.constant dense<0.000000e+00> : vector<16x32xf32>
    %78 = tpu.matmul %76, %77, %cst_14 {dimension_numbers = #tpu.dot_dimension_numbers<[1], [0], [0], [1], [0, 0, 1, 1], [], []>} : vector<16x32xf32>, vector<32x32xf32>, vector<16x32xf32> -> vector<16x32xf32>
    %c200 = arith.constant 200 : index
    %c0_15 = arith.constant 0 : index
    %79 = vector.load %arg2[%c200, %c0_15] : memref<728x128xf32, #tpu.memory_space<vmem>>, vector<1x32xf32>
    %80 = vector.broadcast %79 : vector<1x32xf32> to vector<16x32xf32>
    %81 = arith.addf %78, %80 : vector<16x32xf32>
    %82 = arith.addf %13, %81 : vector<16x32xf32>
    %c208 = arith.constant 208 : index
    %c0_16 = arith.constant 0 : index
    %83 = vector.load %arg2[%c208, %c0_16] : memref<728x128xf32, #tpu.memory_space<vmem>>, vector<1x32xf32>
    %c216 = arith.constant 216 : index
    %c0_17 = arith.constant 0 : index
    %84 = vector.load %arg2[%c216, %c0_17] : memref<728x128xf32, #tpu.memory_space<vmem>>, vector<1x32xf32>
    %cst_18 = arith.constant dense<0.000000e+00> : vector<16xf32>
    %85 = vector.multi_reduction <add>, %82, %cst_18 [1] : vector<16x32xf32> to vector<16xf32>
    %86 = vector.shape_cast %85 : vector<16xf32> to vector<16x1xf32>
    %cst_19 = arith.constant 3.200000e+01 : f32
    %87 = vector.broadcast %cst_19 : f32 to vector<16x1xf32>
    %88 = arith.divf %86, %87 : vector<16x1xf32>
    %89 = vector.broadcast %88 : vector<16x1xf32> to vector<16x32xf32>
    %90 = arith.subf %82, %89 : vector<16x32xf32>
    %91 = arith.mulf %90, %90 : vector<16x32xf32>
    %cst_20 = arith.constant dense<0.000000e+00> : vector<16xf32>
    %92 = vector.multi_reduction <add>, %91, %cst_20 [1] : vector<16x32xf32> to vector<16xf32>
    %93 = vector.shape_cast %92 : vector<16xf32> to vector<16x1xf32>
    %cst_21 = arith.constant 3.200000e+01 : f32
    %94 = vector.broadcast %cst_21 : f32 to vector<16x1xf32>
    %95 = arith.divf %93, %94 : vector<16x1xf32>
    %cst_22 = arith.constant 9.99999974E-6 : f32
    %96 = vector.broadcast %cst_22 : f32 to vector<16x1xf32>
    %97 = arith.addf %95, %96 : vector<16x1xf32>
    %98 = math.rsqrt %97 : vector<16x1xf32>
    %99 = vector.broadcast %98 : vector<16x1xf32> to vector<16x32xf32>
    %100 = arith.mulf %90, %99 : vector<16x32xf32>
    %101 = vector.broadcast %83 : vector<1x32xf32> to vector<16x32xf32>
    %102 = arith.mulf %100, %101 : vector<16x32xf32>
    %103 = vector.broadcast %84 : vector<1x32xf32> to vector<16x32xf32>
    %104 = arith.addf %102, %103 : vector<16x32xf32>
    %c224 = arith.constant 224 : index
    %c0_23 = arith.constant 0 : index
    %105 = vector.load %arg2[%c224, %c0_23] : memref<728x128xf32, #tpu.memory_space<vmem>>, vector<32x64xf32>
    %cst_24 = arith.constant dense<0.000000e+00> : vector<16x64xf32>
    %106 = tpu.matmul %104, %105, %cst_24 {dimension_numbers = #tpu.dot_dimension_numbers<[1], [0], [0], [1], [0, 0, 1, 1], [], []>} : vector<16x32xf32>, vector<32x64xf32>, vector<16x64xf32> -> vector<16x64xf32>
    %c256 = arith.constant 256 : index
    %c0_25 = arith.constant 0 : index
    %107 = vector.load %arg2[%c256, %c0_25] : memref<728x128xf32, #tpu.memory_space<vmem>>, vector<1x64xf32>
    %108 = vector.broadcast %107 : vector<1x64xf32> to vector<16x64xf32>
    %109 = arith.addf %106, %108 : vector<16x64xf32>
    %cst_26 = arith.constant 0.000000e+00 : f32
    %110 = vector.broadcast %cst_26 : f32 to vector<16x64xf32>
    %111 = arith.maximumf %109, %110 : vector<16x64xf32>
    %c264 = arith.constant 264 : index
    %c0_27 = arith.constant 0 : index
    %112 = vector.load %arg2[%c264, %c0_27] : memref<728x128xf32, #tpu.memory_space<vmem>>, vector<64x32xf32>
    %cst_28 = arith.constant dense<0.000000e+00> : vector<16x32xf32>
    %113 = tpu.matmul %111, %112, %cst_28 {dimension_numbers = #tpu.dot_dimension_numbers<[1], [0], [0], [1], [0, 0, 1, 1], [], []>} : vector<16x64xf32>, vector<64x32xf32>, vector<16x32xf32> -> vector<16x32xf32>
    %c328 = arith.constant 328 : index
    %c0_29 = arith.constant 0 : index
    %114 = vector.load %arg2[%c328, %c0_29] : memref<728x128xf32, #tpu.memory_space<vmem>>, vector<1x32xf32>
    %115 = vector.broadcast %114 : vector<1x32xf32> to vector<16x32xf32>
    %116 = arith.addf %113, %115 : vector<16x32xf32>
    %117 = arith.addf %104, %116 : vector<16x32xf32>
    %c336 = arith.constant 336 : index
    %c0_30 = arith.constant 0 : index
    %118 = vector.load %arg2[%c336, %c0_30] : memref<728x128xf32, #tpu.memory_space<vmem>>, vector<1x32xf32>
    %c344 = arith.constant 344 : index
    %c0_31 = arith.constant 0 : index
    %119 = vector.load %arg2[%c344, %c0_31] : memref<728x128xf32, #tpu.memory_space<vmem>>, vector<1x32xf32>
    %cst_32 = arith.constant dense<0.000000e+00> : vector<16xf32>
    %120 = vector.multi_reduction <add>, %117, %cst_32 [1] : vector<16x32xf32> to vector<16xf32>
    %121 = vector.shape_cast %120 : vector<16xf32> to vector<16x1xf32>
    %cst_33 = arith.constant 3.200000e+01 : f32
    %122 = vector.broadcast %cst_33 : f32 to vector<16x1xf32>
    %123 = arith.divf %121, %122 : vector<16x1xf32>
    %124 = vector.broadcast %123 : vector<16x1xf32> to vector<16x32xf32>
    %125 = arith.subf %117, %124 : vector<16x32xf32>
    %126 = arith.mulf %125, %125 : vector<16x32xf32>
    %cst_34 = arith.constant dense<0.000000e+00> : vector<16xf32>
    %127 = vector.multi_reduction <add>, %126, %cst_34 [1] : vector<16x32xf32> to vector<16xf32>
    %128 = vector.shape_cast %127 : vector<16xf32> to vector<16x1xf32>
    %cst_35 = arith.constant 3.200000e+01 : f32
    %129 = vector.broadcast %cst_35 : f32 to vector<16x1xf32>
    %130 = arith.divf %128, %129 : vector<16x1xf32>
    %cst_36 = arith.constant 9.99999974E-6 : f32
    %131 = vector.broadcast %cst_36 : f32 to vector<16x1xf32>
    %132 = arith.addf %130, %131 : vector<16x1xf32>
    %133 = math.rsqrt %132 : vector<16x1xf32>
    %134 = vector.broadcast %133 : vector<16x1xf32> to vector<16x32xf32>
    %135 = arith.mulf %125, %134 : vector<16x32xf32>
    %136 = vector.broadcast %118 : vector<1x32xf32> to vector<16x32xf32>
    %137 = arith.mulf %135, %136 : vector<16x32xf32>
    %138 = vector.broadcast %119 : vector<1x32xf32> to vector<16x32xf32>
    %139 = arith.addf %137, %138 : vector<16x32xf32>
    %c352 = arith.constant 352 : index
    %c0_37 = arith.constant 0 : index
    %140 = vector.load %arg2[%c352, %c0_37] : memref<728x128xf32, #tpu.memory_space<vmem>>, vector<32x96xf32>
    %cst_38 = arith.constant dense<0.000000e+00> : vector<16x96xf32>
    %141 = tpu.matmul %139, %140, %cst_38 {dimension_numbers = #tpu.dot_dimension_numbers<[1], [0], [0], [1], [0, 0, 1, 1], [], []>} : vector<16x32xf32>, vector<32x96xf32>, vector<16x96xf32> -> vector<16x96xf32>
    %c384 = arith.constant 384 : index
    %c0_39 = arith.constant 0 : index
    %142 = vector.load %arg2[%c384, %c0_39] : memref<728x128xf32, #tpu.memory_space<vmem>>, vector<1x96xf32>
    %143 = vector.broadcast %142 : vector<1x96xf32> to vector<16x96xf32>
    %144 = arith.addf %141, %143 : vector<16x96xf32>
    %145 = vector.extract_strided_slice %144 {offsets = [0, 0], sizes = [16, 32], strides = [1, 1]} : vector<16x96xf32> to vector<16x32xf32>
    %146 = vector.extract_strided_slice %144 {offsets = [0, 32], sizes = [16, 32], strides = [1, 1]} : vector<16x96xf32> to vector<16x32xf32>
    %147 = vector.extract_strided_slice %144 {offsets = [0, 64], sizes = [16, 32], strides = [1, 1]} : vector<16x96xf32> to vector<16x32xf32>
    %148 = vector.extract_strided_slice %145 {offsets = [0, 0], sizes = [8, 32], strides = [1, 1]} : vector<16x32xf32> to vector<8x32xf32>
    %149 = vector.extract_strided_slice %146 {offsets = [0, 0], sizes = [8, 32], strides = [1, 1]} : vector<16x32xf32> to vector<8x32xf32>
    %150 = arith.mulf %148, %149 : vector<8x32xf32>
    %151 = vector.extract_strided_slice %146 {offsets = [8, 0], sizes = [8, 32], strides = [1, 1]} : vector<16x32xf32> to vector<8x32xf32>
    %152 = arith.mulf %148, %151 : vector<8x32xf32>
    %153 = vector.extract_strided_slice %145 {offsets = [8, 0], sizes = [8, 32], strides = [1, 1]} : vector<16x32xf32> to vector<8x32xf32>
    %154 = vector.extract_strided_slice %146 {offsets = [0, 0], sizes = [8, 32], strides = [1, 1]} : vector<16x32xf32> to vector<8x32xf32>
    %155 = arith.mulf %153, %154 : vector<8x32xf32>
    %156 = vector.extract_strided_slice %146 {offsets = [8, 0], sizes = [8, 32], strides = [1, 1]} : vector<16x32xf32> to vector<8x32xf32>
    %157 = arith.mulf %153, %156 : vector<8x32xf32>
    %158 = tpu.concatenate %150, %152, %155, %157 in 0 : vector<8x32xf32>, vector<8x32xf32>, vector<8x32xf32>, vector<8x32xf32> -> vector<32x32xf32>
    %cst_40 = arith.constant dense<0.000000e+00> : vector<32x4xf32>
    %159 = tpu.matmul %158, %14, %cst_40 {dimension_numbers = #tpu.dot_dimension_numbers<[1], [0], [0], [1], [0, 0, 1, 1], [], []>} : vector<32x32xf32>, vector<32x4xf32>, vector<32x4xf32> -> vector<32x4xf32>
    %cst_41 = arith.constant 0.353553385 : f32
    %160 = vector.broadcast %cst_41 : f32 to vector<32x4xf32>
    %161 = arith.mulf %159, %160 : vector<32x4xf32>
    %162 = vector.extract_strided_slice %161 {offsets = [0, 0], sizes = [8, 4], strides = [1, 1]} : vector<32x4xf32> to vector<8x4xf32>
    %163 = vector.extract_strided_slice %161 {offsets = [8, 0], sizes = [8, 4], strides = [1, 1]} : vector<32x4xf32> to vector<8x4xf32>
    %164 = arith.maximumf %162, %163 : vector<8x4xf32>
    %165 = arith.subf %162, %164 : vector<8x4xf32>
    %166 = math.exp %165 : vector<8x4xf32>
    %167 = arith.subf %163, %164 : vector<8x4xf32>
    %168 = math.exp %167 : vector<8x4xf32>
    %169 = arith.addf %166, %168 : vector<8x4xf32>
    %170 = tpu.reciprocal %169 {approx = true} : vector<8x4xf32> -> vector<8x4xf32>
    %171 = arith.mulf %166, %170 : vector<8x4xf32>
    %172 = arith.mulf %168, %170 : vector<8x4xf32>
    %173 = vector.extract_strided_slice %161 {offsets = [16, 0], sizes = [8, 4], strides = [1, 1]} : vector<32x4xf32> to vector<8x4xf32>
    %174 = vector.extract_strided_slice %161 {offsets = [24, 0], sizes = [8, 4], strides = [1, 1]} : vector<32x4xf32> to vector<8x4xf32>
    %175 = arith.maximumf %173, %174 : vector<8x4xf32>
    %176 = arith.subf %173, %175 : vector<8x4xf32>
    %177 = math.exp %176 : vector<8x4xf32>
    %178 = arith.subf %174, %175 : vector<8x4xf32>
    %179 = math.exp %178 : vector<8x4xf32>
    %180 = arith.addf %177, %179 : vector<8x4xf32>
    %181 = tpu.reciprocal %180 {approx = true} : vector<8x4xf32> -> vector<8x4xf32>
    %182 = arith.mulf %177, %181 : vector<8x4xf32>
    %183 = arith.mulf %179, %181 : vector<8x4xf32>
    %184 = tpu.concatenate %171, %172, %182, %183 in 0 : vector<8x4xf32>, vector<8x4xf32>, vector<8x4xf32>, vector<8x4xf32> -> vector<32x4xf32>
    %cst_42 = arith.constant dense<0.000000e+00> : vector<32x32xf32>
    %185 = tpu.matmul %184, %15, %cst_42 {dimension_numbers = #tpu.dot_dimension_numbers<[1], [0], [0], [1], [0, 0, 1, 1], [], []>} : vector<32x4xf32>, vector<4x32xf32>, vector<32x32xf32> -> vector<32x32xf32>
    %186 = vector.extract_strided_slice %185 {offsets = [0, 0], sizes = [8, 32], strides = [1, 1]} : vector<32x32xf32> to vector<8x32xf32>
    %187 = vector.extract_strided_slice %147 {offsets = [0, 0], sizes = [8, 32], strides = [1, 1]} : vector<16x32xf32> to vector<8x32xf32>
    %188 = arith.mulf %186, %187 : vector<8x32xf32>
    %189 = vector.extract_strided_slice %185 {offsets = [8, 0], sizes = [8, 32], strides = [1, 1]} : vector<32x32xf32> to vector<8x32xf32>
    %190 = vector.extract_strided_slice %147 {offsets = [8, 0], sizes = [8, 32], strides = [1, 1]} : vector<16x32xf32> to vector<8x32xf32>
    %191 = arith.mulf %189, %190 : vector<8x32xf32>
    %192 = arith.addf %188, %191 : vector<8x32xf32>
    %193 = vector.extract_strided_slice %185 {offsets = [16, 0], sizes = [8, 32], strides = [1, 1]} : vector<32x32xf32> to vector<8x32xf32>
    %194 = vector.extract_strided_slice %147 {offsets = [0, 0], sizes = [8, 32], strides = [1, 1]} : vector<16x32xf32> to vector<8x32xf32>
    %195 = arith.mulf %193, %194 : vector<8x32xf32>
    %196 = vector.extract_strided_slice %185 {offsets = [24, 0], sizes = [8, 32], strides = [1, 1]} : vector<32x32xf32> to vector<8x32xf32>
    %197 = vector.extract_strided_slice %147 {offsets = [8, 0], sizes = [8, 32], strides = [1, 1]} : vector<16x32xf32> to vector<8x32xf32>
    %198 = arith.mulf %196, %197 : vector<8x32xf32>
    %199 = arith.addf %195, %198 : vector<8x32xf32>
    %200 = tpu.concatenate %192, %199 in 0 : vector<8x32xf32>, vector<8x32xf32> -> vector<16x32xf32>
    %c392 = arith.constant 392 : index
    %c0_43 = arith.constant 0 : index
    %201 = vector.load %arg2[%c392, %c0_43] : memref<728x128xf32, #tpu.memory_space<vmem>>, vector<32x32xf32>
    %cst_44 = arith.constant dense<0.000000e+00> : vector<16x32xf32>
    %202 = tpu.matmul %200, %201, %cst_44 {dimension_numbers = #tpu.dot_dimension_numbers<[1], [0], [0], [1], [0, 0, 1, 1], [], []>} : vector<16x32xf32>, vector<32x32xf32>, vector<16x32xf32> -> vector<16x32xf32>
    %c424 = arith.constant 424 : index
    %c0_45 = arith.constant 0 : index
    %203 = vector.load %arg2[%c424, %c0_45] : memref<728x128xf32, #tpu.memory_space<vmem>>, vector<1x32xf32>
    %204 = vector.broadcast %203 : vector<1x32xf32> to vector<16x32xf32>
    %205 = arith.addf %202, %204 : vector<16x32xf32>
    %206 = arith.addf %139, %205 : vector<16x32xf32>
    %c432 = arith.constant 432 : index
    %c0_46 = arith.constant 0 : index
    %207 = vector.load %arg2[%c432, %c0_46] : memref<728x128xf32, #tpu.memory_space<vmem>>, vector<1x32xf32>
    %c440 = arith.constant 440 : index
    %c0_47 = arith.constant 0 : index
    %208 = vector.load %arg2[%c440, %c0_47] : memref<728x128xf32, #tpu.memory_space<vmem>>, vector<1x32xf32>
    %cst_48 = arith.constant dense<0.000000e+00> : vector<16xf32>
    %209 = vector.multi_reduction <add>, %206, %cst_48 [1] : vector<16x32xf32> to vector<16xf32>
    %210 = vector.shape_cast %209 : vector<16xf32> to vector<16x1xf32>
    %cst_49 = arith.constant 3.200000e+01 : f32
    %211 = vector.broadcast %cst_49 : f32 to vector<16x1xf32>
    %212 = arith.divf %210, %211 : vector<16x1xf32>
    %213 = vector.broadcast %212 : vector<16x1xf32> to vector<16x32xf32>
    %214 = arith.subf %206, %213 : vector<16x32xf32>
    %215 = arith.mulf %214, %214 : vector<16x32xf32>
    %cst_50 = arith.constant dense<0.000000e+00> : vector<16xf32>
    %216 = vector.multi_reduction <add>, %215, %cst_50 [1] : vector<16x32xf32> to vector<16xf32>
    %217 = vector.shape_cast %216 : vector<16xf32> to vector<16x1xf32>
    %cst_51 = arith.constant 3.200000e+01 : f32
    %218 = vector.broadcast %cst_51 : f32 to vector<16x1xf32>
    %219 = arith.divf %217, %218 : vector<16x1xf32>
    %cst_52 = arith.constant 9.99999974E-6 : f32
    %220 = vector.broadcast %cst_52 : f32 to vector<16x1xf32>
    %221 = arith.addf %219, %220 : vector<16x1xf32>
    %222 = math.rsqrt %221 : vector<16x1xf32>
    %223 = vector.broadcast %222 : vector<16x1xf32> to vector<16x32xf32>
    %224 = arith.mulf %214, %223 : vector<16x32xf32>
    %225 = vector.broadcast %207 : vector<1x32xf32> to vector<16x32xf32>
    %226 = arith.mulf %224, %225 : vector<16x32xf32>
    %227 = vector.broadcast %208 : vector<1x32xf32> to vector<16x32xf32>
    %228 = arith.addf %226, %227 : vector<16x32xf32>
    %c448 = arith.constant 448 : index
    %c0_53 = arith.constant 0 : index
    %229 = vector.load %arg2[%c448, %c0_53] : memref<728x128xf32, #tpu.memory_space<vmem>>, vector<32x64xf32>
    %cst_54 = arith.constant dense<0.000000e+00> : vector<16x64xf32>
    %230 = tpu.matmul %228, %229, %cst_54 {dimension_numbers = #tpu.dot_dimension_numbers<[1], [0], [0], [1], [0, 0, 1, 1], [], []>} : vector<16x32xf32>, vector<32x64xf32>, vector<16x64xf32> -> vector<16x64xf32>
    %c480 = arith.constant 480 : index
    %c0_55 = arith.constant 0 : index
    %231 = vector.load %arg2[%c480, %c0_55] : memref<728x128xf32, #tpu.memory_space<vmem>>, vector<1x64xf32>
    %232 = vector.broadcast %231 : vector<1x64xf32> to vector<16x64xf32>
    %233 = arith.addf %230, %232 : vector<16x64xf32>
    %cst_56 = arith.constant 0.000000e+00 : f32
    %234 = vector.broadcast %cst_56 : f32 to vector<16x64xf32>
    %235 = arith.maximumf %233, %234 : vector<16x64xf32>
    %c488 = arith.constant 488 : index
    %c0_57 = arith.constant 0 : index
    %236 = vector.load %arg2[%c488, %c0_57] : memref<728x128xf32, #tpu.memory_space<vmem>>, vector<64x32xf32>
    %cst_58 = arith.constant dense<0.000000e+00> : vector<16x32xf32>
    %237 = tpu.matmul %235, %236, %cst_58 {dimension_numbers = #tpu.dot_dimension_numbers<[1], [0], [0], [1], [0, 0, 1, 1], [], []>} : vector<16x64xf32>, vector<64x32xf32>, vector<16x32xf32> -> vector<16x32xf32>
    %c552 = arith.constant 552 : index
    %c0_59 = arith.constant 0 : index
    %238 = vector.load %arg2[%c552, %c0_59] : memref<728x128xf32, #tpu.memory_space<vmem>>, vector<1x32xf32>
    %239 = vector.broadcast %238 : vector<1x32xf32> to vector<16x32xf32>
    %240 = arith.addf %237, %239 : vector<16x32xf32>
    %241 = arith.addf %228, %240 : vector<16x32xf32>
    %c560 = arith.constant 560 : index
    %c0_60 = arith.constant 0 : index
    %242 = vector.load %arg2[%c560, %c0_60] : memref<728x128xf32, #tpu.memory_space<vmem>>, vector<1x32xf32>
    %c568 = arith.constant 568 : index
    %c0_61 = arith.constant 0 : index
    %243 = vector.load %arg2[%c568, %c0_61] : memref<728x128xf32, #tpu.memory_space<vmem>>, vector<1x32xf32>
    %cst_62 = arith.constant dense<0.000000e+00> : vector<16xf32>
    %244 = vector.multi_reduction <add>, %241, %cst_62 [1] : vector<16x32xf32> to vector<16xf32>
    %245 = vector.shape_cast %244 : vector<16xf32> to vector<16x1xf32>
    %cst_63 = arith.constant 3.200000e+01 : f32
    %246 = vector.broadcast %cst_63 : f32 to vector<16x1xf32>
    %247 = arith.divf %245, %246 : vector<16x1xf32>
    %248 = vector.broadcast %247 : vector<16x1xf32> to vector<16x32xf32>
    %249 = arith.subf %241, %248 : vector<16x32xf32>
    %250 = arith.mulf %249, %249 : vector<16x32xf32>
    %cst_64 = arith.constant dense<0.000000e+00> : vector<16xf32>
    %251 = vector.multi_reduction <add>, %250, %cst_64 [1] : vector<16x32xf32> to vector<16xf32>
    %252 = vector.shape_cast %251 : vector<16xf32> to vector<16x1xf32>
    %cst_65 = arith.constant 3.200000e+01 : f32
    %253 = vector.broadcast %cst_65 : f32 to vector<16x1xf32>
    %254 = arith.divf %252, %253 : vector<16x1xf32>
    %cst_66 = arith.constant 9.99999974E-6 : f32
    %255 = vector.broadcast %cst_66 : f32 to vector<16x1xf32>
    %256 = arith.addf %254, %255 : vector<16x1xf32>
    %257 = math.rsqrt %256 : vector<16x1xf32>
    %258 = vector.broadcast %257 : vector<16x1xf32> to vector<16x32xf32>
    %259 = arith.mulf %249, %258 : vector<16x32xf32>
    %260 = vector.broadcast %242 : vector<1x32xf32> to vector<16x32xf32>
    %261 = arith.mulf %259, %260 : vector<16x32xf32>
    %262 = vector.broadcast %243 : vector<1x32xf32> to vector<16x32xf32>
    %263 = arith.addf %261, %262 : vector<16x32xf32>
    %c120 = arith.constant 120 : index
    %c0_67 = arith.constant 0 : index
    %264 = vector.load %arg2[%c120, %c0_67] : memref<728x128xf32, #tpu.memory_space<vmem>>, vector<2x16xf32>
    %cst_68 = arith.constant dense<0.000000e+00> : vector<2x32xf32>
    %265 = tpu.matmul %264, %263, %cst_68 {dimension_numbers = #tpu.dot_dimension_numbers<[1], [0], [0], [1], [0, 0, 1, 1], [], []>} : vector<2x16xf32>, vector<16x32xf32>, vector<2x32xf32> -> vector<2x32xf32>
    %c0_69 = arith.constant 0 : index
    %c0_70 = arith.constant 0 : index
    %266 = vector.load %arg1[%c0_69, %c0_70] : memref<2x16xf32, #tpu.memory_space<vmem>>, vector<2x16xf32>
    %c576 = arith.constant 576 : index
    %c0_71 = arith.constant 0 : index
    %267 = vector.load %arg2[%c576, %c0_71] : memref<728x128xf32, #tpu.memory_space<vmem>>, vector<32x32xf32>
    %cst_72 = arith.constant dense<0.000000e+00> : vector<2x32xf32>
    %268 = tpu.matmul %265, %267, %cst_72 {dimension_numbers = #tpu.dot_dimension_numbers<[1], [0], [0], [1], [0, 0, 1, 1], [], []>} : vector<2x32xf32>, vector<32x32xf32>, vector<2x32xf32> -> vector<2x32xf32>
    %c608 = arith.constant 608 : index
    %c0_73 = arith.constant 0 : index
    %269 = vector.load %arg2[%c608, %c0_73] : memref<728x128xf32, #tpu.memory_space<vmem>>, vector<16x32xf32>
    %cst_74 = arith.constant dense<0.000000e+00> : vector<2x32xf32>
    %270 = tpu.matmul %266, %269, %cst_74 {dimension_numbers = #tpu.dot_dimension_numbers<[1], [0], [0], [1], [0, 0, 1, 1], [], []>} : vector<2x16xf32>, vector<16x32xf32>, vector<2x32xf32> -> vector<2x32xf32>
    %271 = arith.addf %268, %270 : vector<2x32xf32>
    %c624 = arith.constant 624 : index
    %c0_75 = arith.constant 0 : index
    %272 = vector.load %arg2[%c624, %c0_75] : memref<728x128xf32, #tpu.memory_space<vmem>>, vector<1x32xf32>
    %273 = vector.broadcast %272 : vector<1x32xf32> to vector<2x32xf32>
    %274 = arith.addf %271, %273 : vector<2x32xf32>
    %cst_76 = arith.constant 0.000000e+00 : f32
    %275 = vector.broadcast %cst_76 : f32 to vector<2x32xf32>
    %276 = arith.maximumf %274, %275 : vector<2x32xf32>
    %c632 = arith.constant 632 : index
    %c0_77 = arith.constant 0 : index
    %277 = vector.load %arg2[%c632, %c0_77] : memref<728x128xf32, #tpu.memory_space<vmem>>, vector<1x32xf32>
    %278 = vector.broadcast %277 : vector<1x32xf32> to vector<2x32xf32>
    %279 = arith.mulf %276, %278 : vector<2x32xf32>
    %c640 = arith.constant 640 : index
    %c0_78 = arith.constant 0 : index
    %280 = vector.load %arg2[%c640, %c0_78] : memref<728x128xf32, #tpu.memory_space<vmem>>, vector<1x32xf32>
    %281 = vector.broadcast %280 : vector<1x32xf32> to vector<2x32xf32>
    %282 = arith.addf %279, %281 : vector<2x32xf32>
    %c648 = arith.constant 648 : index
    %c0_79 = arith.constant 0 : index
    %283 = vector.load %arg2[%c648, %c0_79] : memref<728x128xf32, #tpu.memory_space<vmem>>, vector<32x16xf32>
    %cst_80 = arith.constant dense<0.000000e+00> : vector<2x16xf32>
    %284 = tpu.matmul %282, %283, %cst_80 {dimension_numbers = #tpu.dot_dimension_numbers<[1], [0], [0], [1], [0, 0, 1, 1], [], []>} : vector<2x32xf32>, vector<32x16xf32>, vector<2x16xf32> -> vector<2x16xf32>
    %c680 = arith.constant 680 : index
    %c0_81 = arith.constant 0 : index
    %285 = vector.load %arg2[%c680, %c0_81] : memref<728x128xf32, #tpu.memory_space<vmem>>, vector<1x16xf32>
    %286 = vector.broadcast %285 : vector<1x16xf32> to vector<2x16xf32>
    %287 = arith.addf %284, %286 : vector<2x16xf32>
    %cst_82 = arith.constant 0.000000e+00 : f32
    %288 = vector.broadcast %cst_82 : f32 to vector<2x16xf32>
    %289 = arith.maximumf %287, %288 : vector<2x16xf32>
    %c688 = arith.constant 688 : index
    %c0_83 = arith.constant 0 : index
    %290 = vector.load %arg2[%c688, %c0_83] : memref<728x128xf32, #tpu.memory_space<vmem>>, vector<1x16xf32>
    %291 = vector.broadcast %290 : vector<1x16xf32> to vector<2x16xf32>
    %292 = arith.mulf %289, %291 : vector<2x16xf32>
    %c696 = arith.constant 696 : index
    %c0_84 = arith.constant 0 : index
    %293 = vector.load %arg2[%c696, %c0_84] : memref<728x128xf32, #tpu.memory_space<vmem>>, vector<1x16xf32>
    %294 = vector.broadcast %293 : vector<1x16xf32> to vector<2x16xf32>
    %295 = arith.addf %292, %294 : vector<2x16xf32>
    %c704 = arith.constant 704 : index
    %c0_85 = arith.constant 0 : index
    %296 = vector.load %arg2[%c704, %c0_85] : memref<728x128xf32, #tpu.memory_space<vmem>>, vector<16x128xf32>
    %cst_86 = arith.constant dense<0.000000e+00> : vector<2x128xf32>
    %297 = tpu.matmul %295, %296, %cst_86 {dimension_numbers = #tpu.dot_dimension_numbers<[1], [0], [0], [1], [0, 0, 1, 1], [], []>} : vector<2x16xf32>, vector<16x128xf32>, vector<2x128xf32> -> vector<2x128xf32>
    %c720 = arith.constant 720 : index
    %c0_87 = arith.constant 0 : index
    %298 = vector.load %arg2[%c720, %c0_87] : memref<728x128xf32, #tpu.memory_space<vmem>>, vector<1x128xf32>
    %299 = vector.broadcast %298 : vector<1x128xf32> to vector<2x128xf32>
    %300 = arith.addf %297, %299 : vector<2x128xf32>
    %c0_88 = arith.constant 0 : index
    %c0_89 = arith.constant 0 : index
    %301 = vector.load %arg3[%c0_88, %c0_89] : memref<2x128xf32, #tpu.memory_space<vmem>>, vector<2x128xf32>
    tpu.vector_store %arg3[%c0_88, %c0_89], %300 {strides = array<i32>} : memref<2x128xf32, #tpu.memory_space<vmem>>, vector<2x128xf32>,
    return
  }
}

</mosaic_0001>

<llo_original>
// kernel: forward.1
$region0: #{forward.1}
  #allocation0 [shape = 'u32[]', space=smem, size = 0x4, offset = 0x4, fixed_abs, tag = 'smem constant byte address 0x4 - core index']
  #allocation1 [shape = 'u32[72,128]{1,0:T(1,128)}', space=vmem, size = 0x9000, scoped, tag = 'internal scratch']
  %s0 = inlined_call_operand.vmem [shape: s32[16,1], index: 0, kind: input, shape index: {}]
  %s1 = inlined_call_operand.vmem [shape: f32[2,16], index: 1, kind: input, shape index: {}]
  %s2 = inlined_call_operand.hbm [shape: f32[728,128], index: 2, kind: input, shape index: {}]
  %s3 = inlined_call_operand.hbm [shape: f32[2,128], index: 3, kind: output, shape index: {}]
  %s4 = sld [smem:[#allocation0]]
  $region26: #{forward.1} parent=0
    _
  %s6 = ssub.s32 1, %s4
  %s7 = scalar_select 0, %s6, %s4
  $region1: #{forward.1} parent=0
    #allocation2 [shape = 'u8[372736]{0}', space=vmem, size = 0x5b000, scoped, tag = 'input window, operand 2, single buffered']
    #allocation3 [shape = 's32[1]{0}', space=sflag, size = 0x4, scoped, tag = 'scoped memory for forward.1']
    #allocation4 [shape = 's32[1]{0}', space=sflag, size = 0x4, scoped, tag = 'scoped memory for forward.1']
    #allocation5 [shape = 'u8[1024]{0}', space=vmem, size = 0x400, scoped, tag = 'output window, operand 0, single buffered']
    %8 = vsyncpa [#allocation3], 0
    %9 = vsyncpa [#allocation4], 0
    // Predicated region
    $region2: #{forward.1} parent=1 // pred_check
      _
    $region3: #{forward.1} parent=1 // pred_check_branch
      %11 = sbr.rel (0) target = $region5
    $region4: #{forward.1} parent=1 // pred_region
      _
    $region5: #{forward.1} parent=1 // pred_fallthru
      _
    // Predicated region
    $region6: #{forward.1} parent=1 // pred_check
      _
    $region7: #{forward.1} parent=1 // pred_check_branch
      %13 = sbr.rel (0) target = $region9
    $region8: #{forward.1} parent=1 // pred_region
      _
    $region9: #{forward.1} parent=1 // pred_fallthru
      _
    // Predicated region
    $region10: #{forward.1} parent=1 // pred_check
      _
    $region11: #{forward.1} parent=1 // pred_check_branch
      %15 = sbr.rel (0) target = $region13
    $region12: #{forward.1} parent=1 // pred_region
      %17 = vsyncadd [#allocation3], 0
      %s18 = sshll.u32 %s2, 4
      %s19 = int_to_ptr.hbm [resolvable:$true] %s18
      %s20 = sshll.u32 [#allocation2], 4
      %s21 = int_to_ptr.vmem [resolvable:$true] %s20
      %26 = dma.hbm_to_vmem [thread:$0]  %s19, 11648, %s21, [#allocation3], 128, 128, 8
    $region13: #{forward.1} parent=1 // pred_fallthru
      _
    // Predicated region
    $region14: #{forward.1} parent=1 // pred_check
      _
    $region15: #{forward.1} parent=1 // pred_check_branch
      %28 = sbr.rel (0) target = $region17
    $region16: #{forward.1} parent=1 // pred_region
      %30 = dma.done [#allocation3], 11648
    $region17: #{forward.1} parent=1 // pred_fallthru
      _
    %v31 = vld [vmem:[%s0] sm:$0xff]
    %v32 = vld [vmem:[%s0 + $0x8] sm:$0xff]
    %v33 = vlaneseq
    %v34 = vshrl.u32 %v33, 7
    %v35 = vadd.s32 %v34, 8
    %v36 = vlaneseq
    %v37 = vand.u32 %v36, 127
    %38 = vset.pattern.permute.xlu0 0
    %39 = vperm.xlu0 %38, %v31
    %v40 = vpop.permute.xlu0 %39
    %41 = vset.pattern.permute.xlu0 0
    %42 = vperm.xlu0 %41, %v32
    %v43 = vpop.permute.xlu0 %42
    %vm44 = vcmp.eq.s32.totalorder %v37, %v40
    %vm45 = vcmp.eq.s32.totalorder %v37, %v43
    %v46 = vadd.s32 %v34, 64
    %v47 = vadd.s32 %v35, 64
    %vm48 = vcmp.eq.s32.totalorder %v37, %v46
    %vm49 = vcmp.eq.s32.totalorder %v37, %v47
    %vm50 = vmor %vm44, %vm48
    %vm51 = vmor %vm45, %vm49
    %v52 = vsel %vm50, 1.0, 0.0
    %v53 = vsel %vm51, 1.0, 0.0
    %v54 = vld [vmem:[#allocation2] sm:$0xff]
    %v55 = vld [vmem:[#allocation2 + $0x8] sm:$0xff]
    %v56 = vld [vmem:[#allocation2 + $0x10] sm:$0xff]
    %v57 = vld [vmem:[#allocation2 + $0x18] sm:$0xff]
    %v58 = vld [vmem:[#allocation2 + $0x20] sm:$0xff]
    %v59 = vld [vmem:[#allocation2 + $0x28] sm:$0xff]
    %v60 = vld [vmem:[#allocation2 + $0x30] sm:$0xff]
    %v61 = vld [vmem:[#allocation2 + $0x38] sm:$0xff]
    %v62 = vld [vmem:[#allocation2 + $0x40] sm:$0xff]
    %v63 = vld [vmem:[#allocation2 + $0x48] sm:$0xff]
    %vm64 = vcmask 654336
    %v66 = vsel %vm64, %v52, 0
    %v69 = vsel %vm64, %v53, 0
    %71 = vmatpush.msra.mxu0 0.0
    %72 = vmatpush.msra.mxu0 0.0
    %73 = vmatpush.msra.mxu0 0.0
    %74 = vmatpush.msra.mxu0 0.0
    %75 = vmatpush.msra.mxu0 0.0
    %76 = vmatpush.msra.mxu0 0.0
    %77 = vmatpush.msra.mxu0 %v63
    %78 = vmatpush.msra.mxu0 %v62
    %79 = vmatpush.msra.mxu0 %v61
    %80 = vmatpush.msra.mxu0 %v60
    %81 = vmatpush.msra.mxu0 %v59
    %82 = vmatpush.msra.mxu0 %v58
    %83 = vmatpush.msra.mxu0 %v57
    %84 = vmatpush.msra.mxu0 %v56
    %85 = vmatpush.msra.mxu0 %v55
    %86 = vmatpush.msra.mxu0 %v54
    %87 = vmatmul.f32.gmra.mxu0 %v66
    %v88 = vpop.f32.mrf.mxu0
    %v89 = vadd.f32 0.0, %v88
    %90 = vmatmul.f32.gmra.mxu0 %v69
    %v91 = vpop.f32.mrf.mxu0
    %v92 = vadd.f32 0.0, %v91
    %93 = vdwg.mxu0
    %v94 = vld [vmem:[#allocation2 + $0x50] sm:$0xff]
    %v95 = vld [vmem:[#allocation2 + $0x58] sm:$0xff]
    %v96 = vld [vmem:[#allocation2 + $0x60] sm:$0xff]
    %v97 = vld [vmem:[#allocation2 + $0x68] sm:$0xff]
    %v98 = vld [vmem:[#allocation2 + $0x70] sm:$0xf]
    %v99 = vld [vmem:[#allocation2 + $0x80] sm:$0xff]
    %v100 = vld [vmem:[#allocation2 + $0x88] sm:$0xff]
    %v101 = vld [vmem:[#allocation2 + $0x90] sm:$0xff]
    %v102 = vld [vmem:[#allocation2 + $0x98] sm:$0xff]
    %v103 = vld [vmem:[#allocation2 + $0xa0] sm:$0x1]
    %v104 = vperm.slane %v103, 0
    %vm105 = vcmask 261120
    %v107 = vsel %vm105, %v89, 0
    %v110 = vsel %vm105, %v92, 0
    %112 = vmatpush.msra.mxu0 0.0
    %113 = vmatpush.msra.mxu0 0.0
    %114 = vmatpush.msra.mxu0 0.0
    %115 = vmatpush.msra.mxu0 0.0
    %116 = vmatpush.msra.mxu0 0.0
    %117 = vmatpush.msra.mxu0 0.0
    %118 = vmatpush.msra.mxu0 0.0
    %119 = vmatpush.msra.mxu0 0.0
    %120 = vmatpush.msra.mxu0 0.0
    %121 = vmatpush.msra.mxu0 0.0
    %122 = vmatpush.msra.mxu0 0.0
    %123 = vmatpush.msra.mxu0 0.0
    %124 = vmatpush.msra.mxu0 %v102
    %125 = vmatpush.msra.mxu0 %v101
    %126 = vmatpush.msra.mxu0 %v100
    %127 = vmatpush.msra.mxu0 %v99
    %128 = vmatmul.f32.gmra.mxu0 %v107
    %v129 = vpop.f32.mrf.mxu0
    %v130 = vadd.f32 %v104, %v129
    %131 = vmatmul.f32.gmra.mxu0 %v110
    %v132 = vpop.f32.mrf.mxu0
    %v133 = vadd.f32 %v104, %v132
    %134 = vdwg.mxu0
    %136 = vrot.lane.b32.xlu0 %v130, 96
    %v137 = vpop.permute.xlu0 %136
    %v139 = vmul.f32 %v130, %v137
    %141 = vrot.lane.b32.xlu0 %v133, 96
    %v142 = vpop.permute.xlu0 %141
    %v144 = vmul.f32 %v130, %v142
    %v145 = vmul.f32 %v133, %v137
    %v146 = vmul.f32 %v133, %v142
    %v148 = vsel %vm105, %v139, 0
    %v151 = vsel %vm105, %v144, 0
    %v154 = vsel %vm105, %v145, 0
    %v157 = vsel %vm105, %v146, 0
    %159 = vmatpush.msra.mxu0 0.0
    %160 = vmatpush.msra.mxu0 0.0
    %161 = vmatpush.msra.mxu0 0.0
    %162 = vmatpush.msra.mxu0 0.0
    %163 = vmatpush.msra.mxu0 0.0
    %164 = vmatpush.msra.mxu0 0.0
    %165 = vmatpush.msra.mxu0 0.0
    %166 = vmatpush.msra.mxu0 0.0
    %167 = vmatpush.msra.mxu0 0.0
    %168 = vmatpush.msra.mxu0 0.0
    %169 = vmatpush.msra.mxu0 0.0
    %170 = vmatpush.msra.mxu0 0.0
    %171 = vmatpush.msra.mxu0 %v97
    %172 = vmatpush.msra.mxu0 %v96
    %173 = vmatpush.msra.mxu0 %v95
    %174 = vmatpush.msra.mxu0 %v94
    %175 = vmatmul.f32.gmra.mxu0 %v148
    %v176 = vpop.f32.mrf.mxu0
    %v177 = vadd.f32 0.0, %v176
    %178 = vmatmul.f32.gmra.mxu0 %v151
    %v179 = vpop.f32.mrf.mxu0
    %v180 = vadd.f32 0.0, %v179
    %181 = vmatmul.f32.gmra.mxu0 %v154
    %v182 = vpop.f32.mrf.mxu0
    %v183 = vadd.f32 0.0, %v182
    %184 = vmatmul.f32.gmra.mxu0 %v157
    %v185 = vpop.f32.mrf.mxu0
    %v186 = vadd.f32 0.0, %v185
    %187 = vdwg.mxu0
    %v188 = vmul.f32 %v177, 0.35355338
    %v189 = vmul.f32 %v180, 0.35355338
    %v190 = vmul.f32 %v183, 0.35355338
    %v191 = vmul.f32 %v186, 0.35355338
    %v192 = vmax.f32 %v188, %v189
    %v193 = vsub.f32 %v188, %v192
    %v194 = vmul.f32 %v193, 1.442695
    %v195 = vpow.pop %v194
    %v196 = vsub.f32 %v189, %v192
    %v197 = vmul.f32 %v196, 1.442695
    %v198 = vpow.pop %v197
    %v199 = vadd.f32 %v195, %v198
    %v200 = vrcp.pop %v199
    %v201 = vmul.f32 %v195, %v200
    %v202 = vmul.f32 %v198, %v200
    %v203 = vmax.f32 %v190, %v191
    %v204 = vsub.f32 %v190, %v203
    %v205 = vmul.f32 %v204, 1.442695
    %v206 = vpow.pop %v205
    %v207 = vsub.f32 %v191, %v203
    %v208 = vmul.f32 %v207, 1.442695
    %v209 = vpow.pop %v208
    %v210 = vadd.f32 %v206, %v209
    %v211 = vrcp.pop %v210
    %v212 = vmul.f32 %v206, %v211
    %v213 = vmul.f32 %v209, %v211
    %vm214 = vcmask 31744
    %v216 = vsel %vm214, %v201, 0
    %v219 = vsel %vm214, %v202, 0
    %v222 = vsel %vm214, %v212, 0
    %v225 = vsel %vm214, %v213, 0
    %vm227 = vcmask 1043456
    %v229 = vsel %vm227, %v98, 0
    %231 = vmatpush.msra.mxu0 0.0
    %232 = vmatpush.msra.mxu0 0.0
    %233 = vmatpush.msra.mxu0 0.0
    %234 = vmatpush.msra.mxu0 0.0
    %235 = vmatpush.msra.mxu0 0.0
    %236 = vmatpush.msra.mxu0 0.0
    %237 = vmatpush.msra.mxu0 0.0
    %238 = vmatpush.msra.mxu0 0.0
    %239 = vmatpush.msra.mxu0 0.0
    %240 = vmatpush.msra.mxu0 0.0
    %241 = vmatpush.msra.mxu0 0.0
    %242 = vmatpush.msra.mxu0 0.0
    %243 = vmatpush.msra.mxu0 0.0
    %244 = vmatpush.msra.mxu0 0.0
    %245 = vmatpush.msra.mxu0 0.0
    %246 = vmatpush.msra.mxu0 %v229
    %247 = vmatmul.f32.gmra.mxu0 %v216
    %v248 = vpop.f32.mrf.mxu0
    %v249 = vadd.f32 0.0, %v248
    %250 = vmatmul.f32.gmra.mxu0 %v219
    %v251 = vpop.f32.mrf.mxu0
    %v252 = vadd.f32 0.0, %v251
    %253 = vmatmul.f32.gmra.mxu0 %v222
    %v254 = vpop.f32.mrf.mxu0
    %v255 = vadd.f32 0.0, %v254
    %256 = vmatmul.f32.gmra.mxu0 %v225
    %v257 = vpop.f32.mrf.mxu0
    %v258 = vadd.f32 0.0, %v257
    %259 = vdwg.mxu0
    %260 = vrot.lane.b32.xlu0 %v130, 64
    %v261 = vpop.permute.xlu0 %260
    %v263 = vmul.f32 %v249, %v261
    %264 = vrot.lane.b32.xlu0 %v133, 64
    %v265 = vpop.permute.xlu0 %264
    %v267 = vmul.f32 %v252, %v265
    %v268 = vadd.f32 %v263, %v267
    %v269 = vmul.f32 %v255, %v261
    %v270 = vmul.f32 %v258, %v265
    %v271 = vadd.f32 %v269, %v270
    %v272 = vld [vmem:[#allocation2 + $0xa8] sm:$0xff]
    %v273 = vld [vmem:[#allocation2 + $0xb0] sm:$0xff]
    %v274 = vld [vmem:[#allocation2 + $0xb8] sm:$0xff]
    %v275 = vld [vmem:[#allocation2 + $0xc0] sm:$0xff]
    %v276 = vld [vmem:[#allocation2 + $0xc8] sm:$0x1]
    %v277 = vperm.slane %v276, 0
    %v279 = vsel %vm105, %v268, 0
    %v282 = vsel %vm105, %v271, 0
    %284 = vmatpush.msra.mxu0 0.0
    %285 = vmatpush.msra.mxu0 0.0
    %286 = vmatpush.msra.mxu0 0.0
    %287 = vmatpush.msra.mxu0 0.0
    %288 = vmatpush.msra.mxu0 0.0
    %289 = vmatpush.msra.mxu0 0.0
    %290 = vmatpush.msra.mxu0 0.0
    %291 = vmatpush.msra.mxu0 0.0
    %292 = vmatpush.msra.mxu0 0.0
    %293 = vmatpush.msra.mxu0 0.0
    %294 = vmatpush.msra.mxu0 0.0
    %295 = vmatpush.msra.mxu0 0.0
    %296 = vmatpush.msra.mxu0 %v275
    %297 = vmatpush.msra.mxu0 %v274
    %298 = vmatpush.msra.mxu0 %v273
    %299 = vmatpush.msra.mxu0 %v272
    %300 = vmatmul.f32.gmra.mxu0 %v279
    %v301 = vpop.f32.mrf.mxu0
    %v302 = vadd.f32 %v277, %v301
    %303 = vmatmul.f32.gmra.mxu0 %v282
    %v304 = vpop.f32.mrf.mxu0
    %v305 = vadd.f32 %v277, %v304
    %306 = vdwg.mxu0
    %v307 = vadd.f32 %v89, %v302
    %v308 = vadd.f32 %v92, %v305
    %v309 = vld [vmem:[#allocation2 + $0xd0] sm:$0x1]
    %v310 = vld [vmem:[#allocation2 + $0xd8] sm:$0x1]
    %v311 = vsel %vm105, %v307, 0.0
    %312 = vadd.xlane.f32.xlu0 %v311
    %v313 = vpop.xlane.xlu0 %312
    %v314 = vsel %vm105, %v308, 0.0
    %315 = vadd.xlane.f32.xlu0 %v314
    %v316 = vpop.xlane.xlu0 %315
    %v317 = vrcp.pop 32.0
    %v318 = vmul.f32 32.0, %v317
    %v319 = vsub.f32 1.0, %v318
    %v320 = vmul.f32 %v317, %v319
    %v321 = vadd.f32 %v317, %v320
    %vm322 = vweird.f32 %v317
    %v323 = vsel %vm322, %v317, %v321
    %v324 = vmul.f32 %v313, %v323
    %v325 = vmul.f32 %v316, %v323
    %v326 = vsub.f32 %v307, %v324
    %v327 = vsub.f32 %v308, %v325
    %v328 = vmul.f32 %v326, %v326
    %v329 = vmul.f32 %v327, %v327
    %v330 = vsel %vm105, %v328, 0.0
    %331 = vadd.xlane.f32.xlu0 %v330
    %v332 = vpop.xlane.xlu0 %331
    %v333 = vsel %vm105, %v329, 0.0
    %334 = vadd.xlane.f32.xlu0 %v333
    %v335 = vpop.xlane.xlu0 %334
    %v336 = vmul.f32 %v332, %v323
    %v337 = vmul.f32 %v335, %v323
    %v338 = vadd.f32 %v336, 1e-05
    %v339 = vadd.f32 %v337, 1e-05
    %v340 = vrsqrt.pop %v338
    %v341 = vmul.f32 %v340, %v338
    %v342 = vmul.f32 %v341, %v340
    %v343 = vmul.f32 0.5, %v342
    %v344 = vsub.f32 1.5, %v343
    %v345 = vmul.f32 %v340, %v344
    %vm346 = vweird.f32 %v338
    %vm347 = vweird.f32 %v340
    %vm348 = vmor %vm346, %vm347
    %v349 = vsel %vm348, %v340, %v345
    %v350 = vrsqrt.pop %v339
    %v351 = vmul.f32 %v350, %v339
    %v352 = vmul.f32 %v351, %v350
    %v353 = vmul.f32 0.5, %v352
    %v354 = vsub.f32 1.5, %v353
    %v355 = vmul.f32 %v350, %v354
    %vm356 = vweird.f32 %v339
    %vm357 = vweird.f32 %v350
    %vm358 = vmor %vm356, %vm357
    %v359 = vsel %vm358, %v350, %v355
    %v360 = vmul.f32 %v326, %v349
    %v361 = vmul.f32 %v327, %v359
    %v362 = vperm.slane %v309, 0
    %v363 = vmul.f32 %v360, %v362
    %v364 = vmul.f32 %v361, %v362
    %v365 = vperm.slane %v310, 0
    %v366 = vadd.f32 %v363, %v365
    %v367 = vadd.f32 %v364, %v365
    %v368 = vld [vmem:[#allocation2 + $0xe0] sm:$0xff]
    %v369 = vld [vmem:[#allocation2 + $0xe8] sm:$0xff]
    %v370 = vld [vmem:[#allocation2 + $0xf0] sm:$0xff]
    %v371 = vld [vmem:[#allocation2 + $0xf8] sm:$0xff]
    %v372 = vld [vmem:[#allocation2 + $0x100] sm:$0x1]
    %v373 = vperm.slane %v372, 0
    %v375 = vsel %vm105, %v366, 0
    %v378 = vsel %vm105, %v367, 0
    %380 = vmatpush.msra.mxu0 0.0
    %381 = vmatpush.msra.mxu0 0.0
    %382 = vmatpush.msra.mxu0 0.0
    %383 = vmatpush.msra.mxu0 0.0
    %384 = vmatpush.msra.mxu0 0.0
    %385 = vmatpush.msra.mxu0 0.0
    %386 = vmatpush.msra.mxu0 0.0
    %387 = vmatpush.msra.mxu0 0.0
    %388 = vmatpush.msra.mxu0 0.0
    %389 = vmatpush.msra.mxu0 0.0
    %390 = vmatpush.msra.mxu0 0.0
    %391 = vmatpush.msra.mxu0 0.0
    %392 = vmatpush.msra.mxu0 %v371
    %393 = vmatpush.msra.mxu0 %v370
    %394 = vmatpush.msra.mxu0 %v369
    %395 = vmatpush.msra.mxu0 %v368
    %396 = vmatmul.f32.gmra.mxu0 %v375
    %v397 = vpop.f32.mrf.mxu0
    %v398 = vadd.f32 %v373, %v397
    %399 = vmatmul.f32.gmra.mxu0 %v378
    %v400 = vpop.f32.mrf.mxu0
    %v401 = vadd.f32 %v373, %v400
    %402 = vdwg.mxu0
    %v403 = vmax.f32 %v398, 0.0
    %v404 = vmax.f32 %v401, 0.0
    %v405 = vld [vmem:[#allocation2 + $0x108] sm:$0xff]
    %v406 = vld [vmem:[#allocation2 + $0x110] sm:$0xff]
    %v407 = vld [vmem:[#allocation2 + $0x118] sm:$0xff]
    %v408 = vld [vmem:[#allocation2 + $0x120] sm:$0xff]
    %v409 = vld [vmem:[#allocation2 + $0x128] sm:$0xff]
    %v410 = vld [vmem:[#allocation2 + $0x130] sm:$0xff]
    %v411 = vld [vmem:[#allocation2 + $0x138] sm:$0xff]
    %v412 = vld [vmem:[#allocation2 + $0x140] sm:$0xff]
    %v413 = vld [vmem:[#allocation2 + $0x148] sm:$0x1]
    %v414 = vperm.slane %v413, 0
    %vm415 = vcmask 523264
    %v417 = vsel %vm415, %v403, 0
    %v420 = vsel %vm415, %v404, 0
    %422 = vmatpush.msra.mxu0 0.0
    %423 = vmatpush.msra.mxu0 0.0
    %424 = vmatpush.msra.mxu0 0.0
    %425 = vmatpush.msra.mxu0 0.0
    %426 = vmatpush.msra.mxu0 0.0
    %427 = vmatpush.msra.mxu0 0.0
    %428 = vmatpush.msra.mxu0 0.0
    %429 = vmatpush.msra.mxu0 0.0
    %430 = vmatpush.msra.mxu0 %v412
    %431 = vmatpush.msra.mxu0 %v411
    %432 = vmatpush.msra.mxu0 %v410
    %433 = vmatpush.msra.mxu0 %v409
    %434 = vmatpush.msra.mxu0 %v408
    %435 = vmatpush.msra.mxu0 %v407
    %436 = vmatpush.msra.mxu0 %v406
    %437 = vmatpush.msra.mxu0 %v405
    %438 = vmatmul.f32.gmra.mxu0 %v417
    %v439 = vpop.f32.mrf.mxu0
    %v440 = vadd.f32 %v414, %v439
    %441 = vmatmul.f32.gmra.mxu0 %v420
    %v442 = vpop.f32.mrf.mxu0
    %v443 = vadd.f32 %v414, %v442
    %444 = vdwg.mxu0
    %v445 = vadd.f32 %v366, %v440
    %v446 = vadd.f32 %v367, %v443
    %v447 = vld [vmem:[#allocation2 + $0x150] sm:$0x1]
    %v448 = vld [vmem:[#allocation2 + $0x158] sm:$0x1]
    %v449 = vsel %vm105, %v445, 0.0
    %450 = vadd.xlane.f32.xlu0 %v449
    %v451 = vpop.xlane.xlu0 %450
    %v452 = vsel %vm105, %v446, 0.0
    %453 = vadd.xlane.f32.xlu0 %v452
    %v454 = vpop.xlane.xlu0 %453
    %v455 = vmul.f32 %v451, %v323
    %v456 = vmul.f32 %v454, %v323
    %v457 = vsub.f32 %v445, %v455
    %v458 = vsub.f32 %v446, %v456
    %v459 = vmul.f32 %v457, %v457
    %v460 = vmul.f32 %v458, %v458
    %v461 = vsel %vm105, %v459, 0.0
    %462 = vadd.xlane.f32.xlu0 %v461
    %v463 = vpop.xlane.xlu0 %462
    %v464 = vsel %vm105, %v460, 0.0
    %465 = vadd.xlane.f32.xlu0 %v464
    %v466 = vpop.xlane.xlu0 %465
    %v467 = vmul.f32 %v463, %v323
    %v468 = vmul.f32 %v466, %v323
    %v469 = vadd.f32 %v467, 1e-05
    %v470 = vadd.f32 %v468, 1e-05
    %v471 = vrsqrt.pop %v469
    %v472 = vmul.f32 %v471, %v469
    %v473 = vmul.f32 %v472, %v471
    %v474 = vmul.f32 0.5, %v473
    %v475 = vsub.f32 1.5, %v474
    %v476 = vmul.f32 %v471, %v475
    %vm477 = vweird.f32 %v469
    %vm478 = vweird.f32 %v471
    %vm479 = vmor %vm477, %vm478
    %v480 = vsel %vm479, %v471, %v476
    %v481 = vrsqrt.pop %v470
    %v482 = vmul.f32 %v481, %v470
    %v483 = vmul.f32 %v482, %v481
    %v484 = vmul.f32 0.5, %v483
    %v485 = vsub.f32 1.5, %v484
    %v486 = vmul.f32 %v481, %v485
    %vm487 = vweird.f32 %v470
    %vm488 = vweird.f32 %v481
    %vm489 = vmor %vm487, %vm488
    %v490 = vsel %vm489, %v481, %v486
    %v491 = vmul.f32 %v457, %v480
    %v492 = vmul.f32 %v458, %v490
    %v493 = vperm.slane %v447, 0
    %v494 = vmul.f32 %v491, %v493
    %v495 = vmul.f32 %v492, %v493
    %v496 = vperm.slane %v448, 0
    %v497 = vadd.f32 %v494, %v496
    %v498 = vadd.f32 %v495, %v496
    %v499 = vld [vmem:[#allocation2 + $0x160] sm:$0xff]
    %v500 = vld [vmem:[#allocation2 + $0x168] sm:$0xff]
    %v501 = vld [vmem:[#allocation2 + $0x170] sm:$0xff]
    %v502 = vld [vmem:[#allocation2 + $0x178] sm:$0xff]
    %v503 = vld [vmem:[#allocation2 + $0x180] sm:$0x1]
    %v504 = vperm.slane %v503, 0
    %v506 = vsel %vm105, %v497, 0
    %v509 = vsel %vm105, %v498, 0
    %511 = vmatpush.msra.mxu0 0.0
    %512 = vmatpush.msra.mxu0 0.0
    %513 = vmatpush.msra.mxu0 0.0
    %514 = vmatpush.msra.mxu0 0.0
    %515 = vmatpush.msra.mxu0 0.0
    %516 = vmatpush.msra.mxu0 0.0
    %517 = vmatpush.msra.mxu0 0.0
    %518 = vmatpush.msra.mxu0 0.0
    %519 = vmatpush.msra.mxu0 0.0
    %520 = vmatpush.msra.mxu0 0.0
    %521 = vmatpush.msra.mxu0 0.0
    %522 = vmatpush.msra.mxu0 0.0
    %523 = vmatpush.msra.mxu0 %v502
    %524 = vmatpush.msra.mxu0 %v501
    %525 = vmatpush.msra.mxu0 %v500
    %526 = vmatpush.msra.mxu0 %v499
    %527 = vmatmul.f32.gmra.mxu0 %v506
    %v528 = vpop.f32.mrf.mxu0
    %v529 = vadd.f32 %v504, %v528
    %530 = vmatmul.f32.gmra.mxu0 %v509
    %v531 = vpop.f32.mrf.mxu0
    %v532 = vadd.f32 %v504, %v531
    %533 = vdwg.mxu0
    %535 = vrot.lane.b32.xlu0 %v529, 96
    %v536 = vpop.permute.xlu0 %535
    %v538 = vmul.f32 %v529, %v536
    %540 = vrot.lane.b32.xlu0 %v532, 96
    %v541 = vpop.permute.xlu0 %540
    %v543 = vmul.f32 %v529, %v541
    %v544 = vmul.f32 %v532, %v536
    %v545 = vmul.f32 %v532, %v541
    %v547 = vsel %vm105, %v538, 0
    %v550 = vsel %vm105, %v543, 0
    %v553 = vsel %vm105, %v544, 0
    %v556 = vsel %vm105, %v545, 0
    %558 = vmatpush.msra.mxu0 0.0
    %559 = vmatpush.msra.mxu0 0.0
    %560 = vmatpush.msra.mxu0 0.0
    %561 = vmatpush.msra.mxu0 0.0
    %562 = vmatpush.msra.mxu0 0.0
    %563 = vmatpush.msra.mxu0 0.0
    %564 = vmatpush.msra.mxu0 0.0
    %565 = vmatpush.msra.mxu0 0.0
    %566 = vmatpush.msra.mxu0 0.0
    %567 = vmatpush.msra.mxu0 0.0
    %568 = vmatpush.msra.mxu0 0.0
    %569 = vmatpush.msra.mxu0 0.0
    %570 = vmatpush.msra.mxu0 %v97
    %571 = vmatpush.msra.mxu0 %v96
    %572 = vmatpush.msra.mxu0 %v95
    %573 = vmatpush.msra.mxu0 %v94
    %574 = vmatmul.f32.gmra.mxu0 %v547
    %v575 = vpop.f32.mrf.mxu0
    %v576 = vadd.f32 0.0, %v575
    %577 = vmatmul.f32.gmra.mxu0 %v550
    %v578 = vpop.f32.mrf.mxu0
    %v579 = vadd.f32 0.0, %v578
    %580 = vmatmul.f32.gmra.mxu0 %v553
    %v581 = vpop.f32.mrf.mxu0
    %v582 = vadd.f32 0.0, %v581
    %583 = vmatmul.f32.gmra.mxu0 %v556
    %v584 = vpop.f32.mrf.mxu0
    %v585 = vadd.f32 0.0, %v584
    %586 = vdwg.mxu0
    %v587 = vmul.f32 %v576, 0.35355338
    %v588 = vmul.f32 %v579, 0.35355338
    %v589 = vmul.f32 %v582, 0.35355338
    %v590 = vmul.f32 %v585, 0.35355338
    %v591 = vmax.f32 %v587, %v588
    %v592 = vsub.f32 %v587, %v591
    %v593 = vmul.f32 %v592, 1.442695
    %v594 = vpow.pop %v593
    %v595 = vsub.f32 %v588, %v591
    %v596 = vmul.f32 %v595, 1.442695
    %v597 = vpow.pop %v596
    %v598 = vadd.f32 %v594, %v597
    %v599 = vrcp.pop %v598
    %v600 = vmul.f32 %v594, %v599
    %v601 = vmul.f32 %v597, %v599
    %v602 = vmax.f32 %v589, %v590
    %v603 = vsub.f32 %v589, %v602
    %v604 = vmul.f32 %v603, 1.442695
    %v605 = vpow.pop %v604
    %v606 = vsub.f32 %v590, %v602
    %v607 = vmul.f32 %v606, 1.442695
    %v608 = vpow.pop %v607
    %v609 = vadd.f32 %v605, %v608
    %v610 = vrcp.pop %v609
    %v611 = vmul.f32 %v605, %v610
    %v612 = vmul.f32 %v608, %v610
    %v614 = vsel %vm214, %v600, 0
    %v617 = vsel %vm214, %v601, 0
    %v620 = vsel %vm214, %v611, 0
    %v623 = vsel %vm214, %v612, 0
    %625 = vmatpush.msra.mxu0 0.0
    %626 = vmatpush.msra.mxu0 0.0
    %627 = vmatpush.msra.mxu0 0.0
    %628 = vmatpush.msra.mxu0 0.0
    %629 = vmatpush.msra.mxu0 0.0
    %630 = vmatpush.msra.mxu0 0.0
    %631 = vmatpush.msra.mxu0 0.0
    %632 = vmatpush.msra.mxu0 0.0
    %633 = vmatpush.msra.mxu0 0.0
    %634 = vmatpush.msra.mxu0 0.0
    %635 = vmatpush.msra.mxu0 0.0
    %636 = vmatpush.msra.mxu0 0.0
    %637 = vmatpush.msra.mxu0 0.0
    %638 = vmatpush.msra.mxu0 0.0
    %639 = vmatpush.msra.mxu0 0.0
    %640 = vmatpush.msra.mxu0 %v229
    %641 = vmatmul.f32.gmra.mxu0 %v614
    %v642 = vpop.f32.mrf.mxu0
    %v643 = vadd.f32 0.0, %v642
    %644 = vmatmul.f32.gmra.mxu0 %v617
    %v645 = vpop.f32.mrf.mxu0
    %v646 = vadd.f32 0.0, %v645
    %647 = vmatmul.f32.gmra.mxu0 %v620
    %v648 = vpop.f32.mrf.mxu0
    %v649 = vadd.f32 0.0, %v648
    %650 = vmatmul.f32.gmra.mxu0 %v623
    %v651 = vpop.f32.mrf.mxu0
    %v652 = vadd.f32 0.0, %v651
    %653 = vdwg.mxu0
    %654 = vrot.lane.b32.xlu0 %v529, 64
    %v655 = vpop.permute.xlu0 %654
    %v657 = vmul.f32 %v643, %v655
    %658 = vrot.lane.b32.xlu0 %v532, 64
    %v659 = vpop.permute.xlu0 %658
    %v661 = vmul.f32 %v646, %v659
    %v662 = vadd.f32 %v657, %v661
    %v663 = vmul.f32 %v649, %v655
    %v664 = vmul.f32 %v652, %v659
    %v665 = vadd.f32 %v663, %v664
    %v666 = vld [vmem:[#allocation2 + $0x188] sm:$0xff]
    %v667 = vld [vmem:[#allocation2 + $0x190] sm:$0xff]
    %v668 = vld [vmem:[#allocation2 + $0x198] sm:$0xff]
    %v669 = vld [vmem:[#allocation2 + $0x1a0] sm:$0xff]
    %v670 = vld [vmem:[#allocation2 + $0x1a8] sm:$0x1]
    %v671 = vperm.slane %v670, 0
    %v673 = vsel %vm105, %v662, 0
    %v676 = vsel %vm105, %v665, 0
    %678 = vmatpush.msra.mxu0 0.0
    %679 = vmatpush.msra.mxu0 0.0
    %680 = vmatpush.msra.mxu0 0.0
    %681 = vmatpush.msra.mxu0 0.0
    %682 = vmatpush.msra.mxu0 0.0
    %683 = vmatpush.msra.mxu0 0.0
    %684 = vmatpush.msra.mxu0 0.0
    %685 = vmatpush.msra.mxu0 0.0
    %686 = vmatpush.msra.mxu0 0.0
    %687 = vmatpush.msra.mxu0 0.0
    %688 = vmatpush.msra.mxu0 0.0
    %689 = vmatpush.msra.mxu0 0.0
    %690 = vmatpush.msra.mxu0 %v669
    %691 = vmatpush.msra.mxu0 %v668
    %692 = vmatpush.msra.mxu0 %v667
    %693 = vmatpush.msra.mxu0 %v666
    %694 = vmatmul.f32.gmra.mxu0 %v673
    %v695 = vpop.f32.mrf.mxu0
    %v696 = vadd.f32 %v671, %v695
    %697 = vmatmul.f32.gmra.mxu0 %v676
    %v698 = vpop.f32.mrf.mxu0
    %v699 = vadd.f32 %v671, %v698
    %700 = vdwg.mxu0
    %v701 = vadd.f32 %v497, %v696
    %v702 = vadd.f32 %v498, %v699
    %v703 = vld [vmem:[#allocation2 + $0x1b0] sm:$0x1]
    %v704 = vld [vmem:[#allocation2 + $0x1b8] sm:$0x1]
    %v705 = vsel %vm105, %v701, 0.0
    %706 = vadd.xlane.f32.xlu0 %v705
    %v707 = vpop.xlane.xlu0 %706
    %v708 = vsel %vm105, %v702, 0.0
    %709 = vadd.xlane.f32.xlu0 %v708
    %v710 = vpop.xlane.xlu0 %709
    %v711 = vmul.f32 %v707, %v323
    %v712 = vmul.f32 %v710, %v323
    %v713 = vsub.f32 %v701, %v711
    %v714 = vsub.f32 %v702, %v712
    %v715 = vmul.f32 %v713, %v713
    %v716 = vmul.f32 %v714, %v714
    %v717 = vsel %vm105, %v715, 0.0
    %718 = vadd.xlane.f32.xlu0 %v717
    %v719 = vpop.xlane.xlu0 %718
    %v720 = vsel %vm105, %v716, 0.0
    %721 = vadd.xlane.f32.xlu0 %v720
    %v722 = vpop.xlane.xlu0 %721
    %v723 = vmul.f32 %v719, %v323
    %v724 = vmul.f32 %v722, %v323
    %v725 = vadd.f32 %v723, 1e-05
    %v726 = vadd.f32 %v724, 1e-05
    %v727 = vrsqrt.pop %v725
    %v728 = vmul.f32 %v727, %v725
    %v729 = vmul.f32 %v728, %v727
    %v730 = vmul.f32 0.5, %v729
    %v731 = vsub.f32 1.5, %v730
    %v732 = vmul.f32 %v727, %v731
    %vm733 = vweird.f32 %v725
    %vm734 = vweird.f32 %v727
    %vm735 = vmor %vm733, %vm734
    %v736 = vsel %vm735, %v727, %v732
    %v737 = vrsqrt.pop %v726
    %v738 = vmul.f32 %v737, %v726
    %v739 = vmul.f32 %v738, %v737
    %v740 = vmul.f32 0.5, %v739
    %v741 = vsub.f32 1.5, %v740
    %v742 = vmul.f32 %v737, %v741
    %vm743 = vweird.f32 %v726
    %vm744 = vweird.f32 %v737
    %vm745 = vmor %vm743, %vm744
    %v746 = vsel %vm745, %v737, %v742
    %v747 = vmul.f32 %v713, %v736
    %v748 = vmul.f32 %v714, %v746
    %v749 = vperm.slane %v703, 0
    %v750 = vmul.f32 %v747, %v749
    %v751 = vmul.f32 %v748, %v749
    %v752 = vperm.slane %v704, 0
    %v753 = vadd.f32 %v750, %v752
    %v754 = vadd.f32 %v751, %v752
    %v755 = vld [vmem:[#allocation2 + $0x1c0] sm:$0xff]
    %v756 = vld [vmem:[#allocation2 + $0x1c8] sm:$0xff]
    %v757 = vld [vmem:[#allocation2 + $0x1d0] sm:$0xff]
    %v758 = vld [vmem:[#allocation2 + $0x1d8] sm:$0xff]
    %v759 = vld [vmem:[#allocation2 + $0x1e0] sm:$0x1]
    %v760 = vperm.slane %v759, 0
    %v762 = vsel %vm105, %v753, 0
    %v765 = vsel %vm105, %v754, 0
    %767 = vmatpush.msra.mxu0 0.0
    %768 = vmatpush.msra.mxu0 0.0
    %769 = vmatpush.msra.mxu0 0.0
    %770 = vmatpush.msra.mxu0 0.0
    %771 = vmatpush.msra.mxu0 0.0
    %772 = vmatpush.msra.mxu0 0.0
    %773 = vmatpush.msra.mxu0 0.0
    %774 = vmatpush.msra.mxu0 0.0
    %775 = vmatpush.msra.mxu0 0.0
    %776 = vmatpush.msra.mxu0 0.0
    %777 = vmatpush.msra.mxu0 0.0
    %778 = vmatpush.msra.mxu0 0.0
    %779 = vmatpush.msra.mxu0 %v758
    %780 = vmatpush.msra.mxu0 %v757
    %781 = vmatpush.msra.mxu0 %v756
    %782 = vmatpush.msra.mxu0 %v755
    %783 = vmatmul.f32.gmra.mxu0 %v762
    %v784 = vpop.f32.mrf.mxu0
    %v785 = vadd.f32 %v760, %v784
    %786 = vmatmul.f32.gmra.mxu0 %v765
    %v787 = vpop.f32.mrf.mxu0
    %v788 = vadd.f32 %v760, %v787
    %789 = vdwg.mxu0
    %v790 = vmax.f32 %v785, 0.0
    %v791 = vmax.f32 %v788, 0.0
    %v792 = vld [vmem:[#allocation2 + $0x1e8] sm:$0xff]
    %v793 = vld [vmem:[#allocation2 + $0x1f0] sm:$0xff]
    %v794 = vld [vmem:[#allocation2 + $0x1f8] sm:$0xff]
    %v795 = vld [vmem:[#allocation2 + $0x200] sm:$0xff]
    %v796 = vld [vmem:[#allocation2 + $0x208] sm:$0xff]
    %v797 = vld [vmem:[#allocation2 + $0x210] sm:$0xff]
    %v798 = vld [vmem:[#allocation2 + $0x218] sm:$0xff]
    %v799 = vld [vmem:[#allocation2 + $0x220] sm:$0xff]
    %v800 = vld [vmem:[#allocation2 + $0x228] sm:$0x1]
    %v801 = vperm.slane %v800, 0
    %v803 = vsel %vm415, %v790, 0
    %v806 = vsel %vm415, %v791, 0
    %808 = vmatpush.msra.mxu0 0.0
    %809 = vmatpush.msra.mxu0 0.0
    %810 = vmatpush.msra.mxu0 0.0
    %811 = vmatpush.msra.mxu0 0.0
    %812 = vmatpush.msra.mxu0 0.0
    %813 = vmatpush.msra.mxu0 0.0
    %814 = vmatpush.msra.mxu0 0.0
    %815 = vmatpush.msra.mxu0 0.0
    %816 = vmatpush.msra.mxu0 %v799
    %817 = vmatpush.msra.mxu0 %v798
    %818 = vmatpush.msra.mxu0 %v797
    %819 = vmatpush.msra.mxu0 %v796
    %820 = vmatpush.msra.mxu0 %v795
    %821 = vmatpush.msra.mxu0 %v794
    %822 = vmatpush.msra.mxu0 %v793
    %823 = vmatpush.msra.mxu0 %v792
    %824 = vmatmul.f32.gmra.mxu0 %v803
    %v825 = vpop.f32.mrf.mxu0
    %v826 = vadd.f32 %v801, %v825
    %827 = vmatmul.f32.gmra.mxu0 %v806
    %v828 = vpop.f32.mrf.mxu0
    %v829 = vadd.f32 %v801, %v828
    %830 = vdwg.mxu0
    %v831 = vadd.f32 %v753, %v826
    %v832 = vadd.f32 %v754, %v829
    %v833 = vld [vmem:[#allocation2 + $0x230] sm:$0x1]
    %v834 = vld [vmem:[#allocation2 + $0x238] sm:$0x1]
    %v835 = vsel %vm105, %v831, 0.0
    %836 = vadd.xlane.f32.xlu0 %v835
    %v837 = vpop.xlane.xlu0 %836
    %v838 = vsel %vm105, %v832, 0.0
    %839 = vadd.xlane.f32.xlu0 %v838
    %v840 = vpop.xlane.xlu0 %839
    %v841 = vmul.f32 %v837, %v323
    %v842 = vmul.f32 %v840, %v323
    %v843 = vsub.f32 %v831, %v841
    %v844 = vsub.f32 %v832, %v842
    %v845 = vmul.f32 %v843, %v843
    %v846 = vmul.f32 %v844, %v844
    %v847 = vsel %vm105, %v845, 0.0
    %848 = vadd.xlane.f32.xlu0 %v847
    %v849 = vpop.xlane.xlu0 %848
    %v850 = vsel %vm105, %v846, 0.0
    %851 = vadd.xlane.f32.xlu0 %v850
    %v852 = vpop.xlane.xlu0 %851
    %v853 = vmul.f32 %v849, %v323
    %v854 = vmul.f32 %v852, %v323
    %v855 = vadd.f32 %v853, 1e-05
    %v856 = vadd.f32 %v854, 1e-05
    %v857 = vrsqrt.pop %v855
    %v858 = vmul.f32 %v857, %v855
    %v859 = vmul.f32 %v858, %v857
    %v860 = vmul.f32 0.5, %v859
    %v861 = vsub.f32 1.5, %v860
    %v862 = vmul.f32 %v857, %v861
    %vm863 = vweird.f32 %v855
    %vm864 = vweird.f32 %v857
    %vm865 = vmor %vm863, %vm864
    %v866 = vsel %vm865, %v857, %v862
    %v867 = vrsqrt.pop %v856
    %v868 = vmul.f32 %v867, %v856
    %v869 = vmul.f32 %v868, %v867
    %v870 = vmul.f32 0.5, %v869
    %v871 = vsub.f32 1.5, %v870
    %v872 = vmul.f32 %v867, %v871
    %vm873 = vweird.f32 %v856
    %vm874 = vweird.f32 %v867
    %vm875 = vmor %vm873, %vm874
    %v876 = vsel %vm875, %v867, %v872
    %v877 = vmul.f32 %v843, %v866
    %v878 = vmul.f32 %v844, %v876
    %v879 = vperm.slane %v833, 0
    %v880 = vmul.f32 %v877, %v879
    %v881 = vmul.f32 %v878, %v879
    %v882 = vperm.slane %v834, 0
    %v883 = vadd.f32 %v880, %v882
    %v884 = vadd.f32 %v881, %v882
    %v885 = vld [vmem:[#allocation2 + $0x78] sm:$0x3]
    %vm886 = vcmask 130048
    %v888 = vsel %vm886, %v885, 0
    %890 = vmatpush.msra.mxu0 0.0
    %891 = vmatpush.msra.mxu0 0.0
    %892 = vmatpush.msra.mxu0 0.0
    %893 = vmatpush.msra.mxu0 0.0
    %894 = vmatpush.msra.mxu0 0.0
    %895 = vmatpush.msra.mxu0 0.0
    %896 = vmatpush.msra.mxu0 0.0
    %897 = vmatpush.msra.mxu0 0.0
    %898 = vmatpush.msra.mxu0 0.0
    %899 = vmatpush.msra.mxu0 0.0
    %900 = vmatpush.msra.mxu0 0.0
    %901 = vmatpush.msra.mxu0 0.0
    %902 = vmatpush.msra.mxu0 0.0
    %903 = vmatpush.msra.mxu0 0.0
    %904 = vmatpush.msra.mxu0 %v884
    %905 = vmatpush.msra.mxu0 %v883
    %906 = vmatmul.f32.gmra.mxu0 %v888
    %v907 = vpop.f32.mrf.mxu0
    %v908 = vadd.f32 0.0, %v907
    %909 = vdwg.mxu0
    %v910 = vld [vmem:[%s1] sm:$0x3]
    %v911 = vld [vmem:[#allocation2 + $0x240] sm:$0xff]
    %v912 = vld [vmem:[#allocation2 + $0x248] sm:$0xff]
    %v913 = vld [vmem:[#allocation2 + $0x250] sm:$0xff]
    %v914 = vld [vmem:[#allocation2 + $0x258] sm:$0xff]
    %v915 = vld [vmem:[#allocation2 + $0x260] sm:$0xff]
    %v916 = vld [vmem:[#allocation2 + $0x268] sm:$0xff]
    %v918 = vsel %vm886, %v910, 0
    %920 = vmatpush.msra.mxu0 0.0
    %921 = vmatpush.msra.mxu0 0.0
    %922 = vmatpush.msra.mxu0 0.0
    %923 = vmatpush.msra.mxu0 0.0
    %924 = vmatpush.msra.mxu0 0.0
    %925 = vmatpush.msra.mxu0 0.0
    %926 = vmatpush.msra.mxu0 0.0
    %927 = vmatpush.msra.mxu0 0.0
    %928 = vmatpush.msra.mxu0 0.0
    %929 = vmatpush.msra.mxu0 0.0
    %930 = vmatpush.msra.mxu0 0.0
    %931 = vmatpush.msra.mxu0 0.0
    %932 = vmatpush.msra.mxu0 0.0
    %933 = vmatpush.msra.mxu0 0.0
    %934 = vmatpush.msra.mxu0 %v916
    %935 = vmatpush.msra.mxu0 %v915
    %936 = vmatmul.f32.gmra.mxu0 %v918
    %v937 = vpop.f32.mrf.mxu0
    %v938 = vadd.f32 0.0, %v937
    %939 = vdwg.mxu0
    %v941 = vsel %vm105, %v908, 0
    %943 = vmatpush.msra.mxu0 0.0
    %944 = vmatpush.msra.mxu0 0.0
    %945 = vmatpush.msra.mxu0 0.0
    %946 = vmatpush.msra.mxu0 0.0
    %947 = vmatpush.msra.mxu0 0.0
    %948 = vmatpush.msra.mxu0 0.0
    %949 = vmatpush.msra.mxu0 0.0
    %950 = vmatpush.msra.mxu0 0.0
    %951 = vmatpush.msra.mxu0 0.0
    %952 = vmatpush.msra.mxu0 0.0
    %953 = vmatpush.msra.mxu0 0.0
    %954 = vmatpush.msra.mxu0 0.0
    %955 = vmatpush.msra.mxu0 %v914
    %956 = vmatpush.msra.mxu0 %v913
    %957 = vmatpush.msra.mxu0 %v912
    %958 = vmatpush.msra.mxu0 %v911
    %959 = vmatmul.f32.gmra.mxu0 %v941
    %v960 = vpop.f32.mrf.mxu0
    %v961 = vadd.f32 %v938, %v960
    %962 = vdwg.mxu0
    %v963 = vld [vmem:[#allocation2 + $0x270] sm:$0x1]
    %v964 = vperm.slane %v963, 0
    %v965 = vadd.f32 %v961, %v964
    %v966 = vmax.f32 %v965, 0.0
    %v967 = vld [vmem:[#allocation2 + $0x278] sm:$0x1]
    %v968 = vperm.slane %v967, 0
    %v969 = vmul.f32 %v966, %v968
    %v970 = vld [vmem:[#allocation2 + $0x280] sm:$0x1]
    %v971 = vperm.slane %v970, 0
    %v972 = vadd.f32 %v969, %v971
    %v973 = vld [vmem:[#allocation2 + $0x288] sm:$0xff]
    %v974 = vld [vmem:[#allocation2 + $0x290] sm:$0xff]
    %v975 = vld [vmem:[#allocation2 + $0x298] sm:$0xff]
    %v976 = vld [vmem:[#allocation2 + $0x2a0] sm:$0xff]
    %v977 = vld [vmem:[#allocation2 + $0x2a8] sm:$0x1]
    %v978 = vperm.slane %v977, 0
    %v980 = vsel %vm105, %v972, 0
    %982 = vmatpush.msra.mxu0 0.0
    %983 = vmatpush.msra.mxu0 0.0
    %984 = vmatpush.msra.mxu0 0.0
    %985 = vmatpush.msra.mxu0 0.0
    %986 = vmatpush.msra.mxu0 0.0
    %987 = vmatpush.msra.mxu0 0.0
    %988 = vmatpush.msra.mxu0 0.0
    %989 = vmatpush.msra.mxu0 0.0
    %990 = vmatpush.msra.mxu0 0.0
    %991 = vmatpush.msra.mxu0 0.0
    %992 = vmatpush.msra.mxu0 0.0
    %993 = vmatpush.msra.mxu0 0.0
    %994 = vmatpush.msra.mxu0 %v976
    %995 = vmatpush.msra.mxu0 %v975
    %996 = vmatpush.msra.mxu0 %v974
    %997 = vmatpush.msra.mxu0 %v973
    %998 = vmatmul.f32.gmra.mxu0 %v980
    %v999 = vpop.f32.mrf.mxu0
    %v1000 = vadd.f32 %v978, %v999
    %1001 = vdwg.mxu0
    %v1002 = vmax.f32 %v1000, 0.0
    %v1003 = vld [vmem:[#allocation2 + $0x2b0] sm:$0x1]
    %v1004 = vperm.slane %v1003, 0
    %v1005 = vmul.f32 %v1002, %v1004
    %v1006 = vld [vmem:[#allocation2 + $0x2b8] sm:$0x1]
    %v1007 = vperm.slane %v1006, 0
    %v1008 = vadd.f32 %v1005, %v1007
    %v1009 = vld [vmem:[#allocation2 + $0x2c0] sm:$0xff]
    %v1010 = vld [vmem:[#allocation2 + $0x2c8] sm:$0xff]
    %v1011 = vld [vmem:[#allocation2 + $0x2d0] sm:$0x1]
    %v1012 = vperm.slane %v1011, 0
    %v1014 = vsel %vm886, %v1008, 0
    %1016 = vmatpush.msra.mxu0 0.0
    %1017 = vmatpush.msra.mxu0 0.0
    %1018 = vmatpush.msra.mxu0 0.0
    %1019 = vmatpush.msra.mxu0 0.0
    %1020 = vmatpush.msra.mxu0 0.0
    %1021 = vmatpush.msra.mxu0 0.0
    %1022 = vmatpush.msra.mxu0 0.0
    %1023 = vmatpush.msra.mxu0 0.0
    %1024 = vmatpush.msra.mxu0 0.0
    %1025 = vmatpush.msra.mxu0 0.0
    %1026 = vmatpush.msra.mxu0 0.0
    %1027 = vmatpush.msra.mxu0 0.0
    %1028 = vmatpush.msra.mxu0 0.0
    %1029 = vmatpush.msra.mxu0 0.0
    %1030 = vmatpush.msra.mxu0 %v1010
    %1031 = vmatpush.msra.mxu0 %v1009
    %1032 = vmatmul.f32.gmra.mxu0 %v1014
    %v1033 = vpop.f32.mrf.mxu0
    %v1034 = vadd.f32 %v1012, %v1033
    %1035 = vdwg.mxu0
    %1036 = vst [vmem:[#allocation5] sm:$0x3] %v1034
    // Predicated region
    $region18: #{forward.1} parent=1 // pred_check
      _
    $region19: #{forward.1} parent=1 // pred_check_branch
      %1038 = sbr.rel (0) target = $region21
    $region20: #{forward.1} parent=1 // pred_region
      %1040 = vsyncadd [#allocation4], 0
      %s1042 = sshll.u32 [#allocation5], 4
      %s1043 = int_to_ptr.vmem [resolvable:$true] %s1042
      %s1044 = sshll.u32 %s3, 4
      %s1045 = int_to_ptr.hbm [resolvable:$true] %s1044
      %1047 = dma.vmem_to_hbm [thread:$0]  %s1043, 32, %s1045, [#allocation4]
    $region21: #{forward.1} parent=1 // pred_fallthru
      _
    // Predicated region
    $region22: #{forward.1} parent=1 // pred_check
      _
    $region23: #{forward.1} parent=1 // pred_check_branch
      %1049 = sbr.rel (0) target = $region25
    $region24: #{forward.1} parent=1 // pred_region
      %1051 = dma.done [#allocation4], 32
    $region25: #{forward.1} parent=1 // pred_fallthru
      _
    %1052 = vsyncpa [#allocation3], 1
    %1053 = vsyncpa [#allocation4], 1

</llo_original>
